<compile_context>
chip_gen: v6e
topology: v6e:2x2x1
jax: 0.10.0
libtpu: 0.0.40
codegen_flags: <defaults>
</compile_context>

<pallas_src>
import jax
import jax.numpy as jnp
from jax.experimental import pallas as pl
from jax.experimental.pallas import tpu as pltpu

_LANE = 128      # f32 vreg lane width
_MAX_TM = 2048   # reshaped rows per grid step -> 256K batch rows (~4 MiB x / step)


def _round_up(a: int, m: int) -> int:
    return ((a + m - 1) // m) * m


def _linreg_kernel(x_ref, m_ref, b_ref, o_ref):
    """x_ref: (TM, 128*D) f32 VMEM; m_ref: (128*D, 128) f32 VMEM (resident);
    b_ref: (1,) f32 SMEM; o_ref: (TM, 128) f32 VMEM.
    o[r, j] = sum_f x[r, D*j + f] * w[f] + b  (== y for batch row 128*r + j)."""
    o_ref[...] = (
        jnp.dot(
            x_ref[...],
            m_ref[...],
            preferred_element_type=jnp.float32,
            precision=jax.lax.Precision.HIGHEST,
        )
        + b_ref[0]
    )


def _linear_regression_forward_pallas(x, weight, bias):
    """x: (B, D) f32 with B % 128 == 0, weight: (1, D), bias: (1,) -> (B, 1)."""
    B, D = x.shape
    if x.dtype != jnp.float32:
        x = x.astype(jnp.float32)  # no-op for the module's native f32 inputs

    m_total = B // _LANE
    # Free bitcast-reshape (row-major -> row-major): no HBM copy under jit.
    x_view = x.reshape(m_total, _LANE * D)

    # Structured weight matrix: Mw[D*j + f, j] = w[f]   (tiny: 128*D*128 f32).
    w = weight.reshape(-1).astype(jnp.float32)                  # (D,)
    eye = jnp.eye(_LANE, dtype=jnp.float32)                     # (128, 128)
    m_w = (eye[:, None, :] * w[None, :, None]).reshape(_LANE * D, _LANE)

    b = bias.reshape(-1).astype(jnp.float32)                    # (1,) -> SMEM scalar

    # Batch tiling: multi-MiB per step; >= 2 blocks when possible so the
    # "parallel" axis shards across v7x's two TensorCores.
    if m_total < 16:
        tm = m_total                                     # single block (full dim)
    else:
        tm = min(_MAX_TM, _round_up(pl.cdiv(m_total, 2), 8))
        tm = min(tm, m_total)
    num_blocks = pl.cdiv(m_total, tm)

    out = pl.pallas_call(
        _linreg_kernel,
        out_shape=jax.ShapeDtypeStruct((m_total, _LANE), jnp.float32),
        grid=(num_blocks,),
        in_specs=[
            pl.BlockSpec((tm, _LANE * D), lambda i: (i, 0)),        # x tile (lane-dense)
            pl.BlockSpec((_LANE * D, _LANE), lambda i: (0, 0)),     # weights, VMEM-resident
            pl.BlockSpec(memory_space=pltpu.MemorySpace.SMEM),      # bias scalar
        ],
        out_specs=pl.BlockSpec((tm, _LANE), lambda i: (i, 0)),      # lane-dense y tile
        compiler_params=pltpu.CompilerParams(
            dimension_semantics=("parallel",),                      # megacore on v7x
            vmem_limit_bytes=32 * 1024 * 1024,
        ),
        cost_estimate=pl.CostEstimate(
            flops=2 * B * D,
            transcendentals=0,
            bytes_accessed=B * D * 4 + B * 4 + _LANE * D * _LANE * 4,
        ),
    )(x_view, m_w, b)

    # (m_total, 128) row-major flattening is y in batch order -> free reshape.
    return out.reshape(B, 1)


def linear_regression_forward(x, weight, bias):
    """Forward pass of LinearRegressionModel: y = x @ W^T + b."""
    B, D = x.shape
    if B % _LANE != 0:
        # Ragged / tiny batch: the free bitcast-reshape needs B % 128 == 0 and a
        # padding copy would add a full HBM pass on a bandwidth-bound op, so use
        # the already-fused XLA matvec for this case.
        return x @ weight.T + bias.reshape(1, 1)
    return _linear_regression_forward_pallas(x, weight, bias)


if __name__ == "__main__":
    key = jax.random.PRNGKey(0)
    k_x, k_w, k_b = jax.random.split(key, 3)

    batch = 2048      # multiple of 128 -> Pallas path; gives a 2-block grid
    input_dim = 4     # small tabular feature dimension (crop-yield data)

    x = jax.random.normal(k_x, (batch, input_dim), dtype=jnp.float32)

    # Deterministic init mirroring nn.Linear default: U(-1/sqrt(D), 1/sqrt(D))
    bound = 1.0 / (input_dim ** 0.5)
    weight = jax.random.uniform(
        k_w, (1, input_dim), minval=-bound, maxval=bound, dtype=jnp.float32
    )
    bias = jax.random.uniform(
        k_b, (1,), minval=-bound, maxval=bound, dtype=jnp.float32
    )

    fwd = jax.jit(linear_regression_forward)
    y = jax.block_until_ready(fwd(x, weight, bias))

    # Exact-f32 VPU reference (avoids MXU default-precision fuzz in the check).
    y_ref = (x * weight.reshape(1, -1)).sum(axis=1, keepdims=True) + bias.reshape(1, 1)

    assert y.shape == (batch, 1)
    assert jnp.allclose(y, y_ref, atol=1e-5, rtol=1e-5)

    print("KERNEL_OK")
</pallas_src>

<mosaic_0001>
module attributes {stable_mosaic.version = 11 : i64} {
  func.func @_linreg_kernel(%arg0: i32, %arg1: memref<8x512xf32, #tpu.memory_space<vmem>>, %arg2: memref<512x128xf32, #tpu.memory_space<vmem>>, %arg3: memref<1xf32, #tpu.memory_space<smem>>, %arg4: memref<8x128xf32, #tpu.memory_space<vmem>>) attributes {dimension_semantics = [#tpu.dimension_semantics<parallel>], iteration_bounds = array<i64: 2>, scalar_prefetch = 0 : i64, scratch_operands = 0 : i64, tpu.core_type = #tpu.core_type<tc>, window_params = [{transform_indices = @transform_0, window_bounds = array<i64: 8, 512>}, {pipeline_mode = #tpu.pipeline_mode<synchronous>, transform_indices = @transform_1, window_bounds = array<i64: 512, 128>}, {transform_indices = @transform_2, window_bounds = array<i64: 1>}, {transform_indices = @transform_3, window_bounds = array<i64: 8, 128>}]} {
    %c0 = arith.constant 0 : index
    %c0_0 = arith.constant 0 : index
    %0 = vector.load %arg1[%c0, %c0_0] : memref<8x512xf32, #tpu.memory_space<vmem>>, vector<8x512xf32>
    %c0_1 = arith.constant 0 : index
    %c0_2 = arith.constant 0 : index
    %1 = vector.load %arg2[%c0_1, %c0_2] : memref<512x128xf32, #tpu.memory_space<vmem>>, vector<512x128xf32>
    %cst = arith.constant dense<0.000000e+00> : vector<8x128xf32>
    %2 = tpu.matmul %0, %1, %cst {dimension_numbers = #tpu.dot_dimension_numbers<[1], [0], [0], [1], [0, 0, 1, 1], [], []>, precision = #tpu.contract_precision<fp32>} : vector<8x512xf32>, vector<512x128xf32>, vector<8x128xf32> -> vector<8x128xf32>
    %c0_3 = arith.constant 0 : index
    %3 = memref.load %arg3[%c0_3] : memref<1xf32, #tpu.memory_space<smem>>
    %4 = vector.broadcast %3 : f32 to vector<8x128xf32>
    %5 = arith.addf %2, %4 : vector<8x128xf32>
    %c0_4 = arith.constant 0 : index
    %c0_5 = arith.constant 0 : index
    %6 = vector.load %arg4[%c0_4, %c0_5] : memref<8x128xf32, #tpu.memory_space<vmem>>, vector<8x128xf32>
    tpu.vector_store %arg4[%c0_4, %c0_5], %5 {strides = array<i32>} : memref<8x128xf32, #tpu.memory_space<vmem>>, vector<8x128xf32>,
    return
  }
  func.func @transform_0(%arg0: i32) -> (i32, i32) {
    %c0_i32 = arith.constant 0 : i32
    %c0_i32_0 = arith.constant 0 : i32
    return %arg0, %c0_i32 : i32, i32
  }
  func.func @transform_1(%arg0: i32) -> (i32, i32) {
    %c0_i32 = arith.constant 0 : i32
    %c0_i32_0 = arith.constant 0 : i32
    %c0_i32_1 = arith.constant 0 : i32
    return %c0_i32, %c0_i32_0 : i32, i32
  }
  func.func @transform_2(%arg0: i32) -> i32 {
    %c0_i32 = arith.constant 0 : i32
    %c0_i32_0 = arith.constant 0 : i32
    return %c0_i32 : i32
  }
  func.func @transform_3(%arg0: i32) -> (i32, i32) {
    %c0_i32 = arith.constant 0 : i32
    %c0_i32_0 = arith.constant 0 : i32
    return %arg0, %c0_i32 : i32, i32
  }
}

</mosaic_0001>

<llo_original>
// kernel: linear_regression_forward.1
$region0: #{linear_regression_forward.1}
  #allocation0 [shape = 'u32[]', space=smem, size = 0x4, offset = 0x4, fixed_abs, tag = 'smem constant byte address 0x4 - core index']
  #allocation1 [shape = 'u32[144,128]{1,0:T(1,128)}', space=vmem, size = 0x12000, scoped, tag = 'internal scratch']
  #allocation2 [shape = 'f32[1]{0:T(128)S(6)}', space=smem, size = 0x200, scoped, tag = 'scoped memory for linear_regression_forward.1']
  %s0 = inlined_call_operand.vmem [shape: f32[16,512], index: 0, kind: input, shape index: {}]
  %s1 = inlined_call_operand.vmem [shape: f32[512,128], index: 1, kind: input, shape index: {}]
  %s2 = inlined_call_operand.<no memory space> [shape: f32[1], index: 2, kind: input, shape index: {}]
  %s3 = inlined_call_operand.hbm [shape: f32[16,128], index: 3, kind: output, shape index: {}]
  %s4 = sld [smem:[#allocation0]]
  $region45: #{linear_regression_forward.1} parent=0
    _
  %s6 = ssub.s32 1, %s4
  %s7 = scalar_select 0, %s6, %s4
  %8 = sst [smem:[#allocation2]] %s2
  $region1: #{linear_regression_forward.1} parent=0
    #allocation3 [shape = 'u8[8192]{0}', space=vmem, size = 0x2000, scoped, tag = 'output window, operand 0']
    #allocation4 [shape = 's32[2]{0}', space=sflag, size = 0x8, scoped, tag = 'scoped memory for linear_regression_forward.1']
    %9 = vsyncpa [#allocation4], 0
    %s10 = scalar_lea.sflag [#allocation4], 1
    %11 = vsyncpa %s10, 0
    loop: start=0, step=1, limit=4
    $region2: #{linear_regression_forward.1} parent=1 // loop_pre_header
      _
    $region3: #{linear_regression_forward.1} parent=1 // loop_header
      %s13 = sphi 0, %s17
      %p14 = scmp.ge.s32.totalorder %s13, 4
      %s23 = sphi 0, %s25
      %s26 = sphi 0, %s23
      %s27 = sphi 0, %s26
      %s43 = sphi 0, %s27
      %s47 = sphi 0, %s47
      %s49 = sphi 0, %s47
      %s50 = sphi 0, %s49
      %s64 = sphi 0, %s50
      %s68 = sphi 0, %s68
      %s70 = sphi 0, %s68
      %s71 = sphi 0, %s70
      %s85 = sphi 0, %s71
      %s91 = sphi 0, %s93
      %s94 = sphi 0, %s91
      %s95 = sphi 0, %s94
      %s111 = sphi 0, %s95
    $region4: #{linear_regression_forward.1} parent=1 // loop_header_branch
      %16 = sbr.rel (%p14) target = $region8
    $region5: #{linear_regression_forward.1} parent=1 // loop_body
      %s18 = ssub.s32 %s13, 1
      %s19 = ssub.s32 %s13, 2
      %s20 = sadd.s32 %s13, 1
      %s21 = ssub.s32 %s13, %s20
      %p22 = scmp.eq.s32.totalorder %s21, 0
      %s24 = sadd.s32 %s23, 1
      %s25 = scalar_select %p22, %s23, %s24
      %p28 = pneg %p22
      %p29 = scmp.eq.s32.totalorder %s13, 1
      %p30 = por %p28, %p29
      %p31 = scmp.ne.s32.totalorder %s23, %s26
      %p32 = scmp.eq.s32.totalorder %s13, 0
      %p33 = por %p31, %p32
      %p34 = scmp.ne.s32.totalorder %s23, %s26
      %p35 = scmp.eq.s32.totalorder %s18, 1
      %p36 = por %p34, %p35
      %p37 = scmp.ne.s32.totalorder %s26, %s27
      %p38 = scmp.eq.s32.totalorder %s18, 0
      %p39 = por %p37, %p38
      %p40 = scmp.ne.s32.totalorder %s26, %s27
      %p41 = scmp.eq.s32.totalorder %s19, 1
      %p42 = por %p40, %p41
      %p44 = scmp.ne.s32.totalorder %s27, %s43
      %p45 = scmp.eq.s32.totalorder %s19, 0
      %p46 = por %p44, %p45
      %s48 = sadd.s32 %s47, 1
      %p51 = scmp.eq.s32.totalorder %s13, 1
      %p52 = scmp.ne.s32.totalorder %s47, %s49
      %p53 = scmp.eq.s32.totalorder %s13, 0
      %p54 = por %p52, %p53
      %p55 = scmp.ne.s32.totalorder %s47, %s49
      %p56 = scmp.eq.s32.totalorder %s18, 1
      %p57 = por %p55, %p56
      %p58 = scmp.ne.s32.totalorder %s49, %s50
      %p59 = scmp.eq.s32.totalorder %s18, 0
      %p60 = por %p58, %p59
      %p61 = scmp.ne.s32.totalorder %s49, %s50
      %p62 = scmp.eq.s32.totalorder %s19, 1
      %p63 = por %p61, %p62
      %p65 = scmp.ne.s32.totalorder %s50, %s64
      %p66 = scmp.eq.s32.totalorder %s19, 0
      %p67 = por %p65, %p66
      %s69 = sadd.s32 %s68, 1
      %p72 = scmp.eq.s32.totalorder %s13, 1
      %p73 = scmp.ne.s32.totalorder %s68, %s70
      %p74 = scmp.eq.s32.totalorder %s13, 0
      %p75 = por %p73, %p74
      %p76 = scmp.ne.s32.totalorder %s68, %s70
      %p77 = scmp.eq.s32.totalorder %s18, 1
      %p78 = por %p76, %p77
      %p79 = scmp.ne.s32.totalorder %s70, %s71
      %p80 = scmp.eq.s32.totalorder %s18, 0
      %p81 = por %p79, %p80
      %p82 = scmp.ne.s32.totalorder %s70, %s71
      %p83 = scmp.eq.s32.totalorder %s19, 1
      %p84 = por %p82, %p83
      %p86 = scmp.ne.s32.totalorder %s71, %s85
      %p87 = scmp.eq.s32.totalorder %s19, 0
      %p88 = por %p86, %p87
      %s89 = ssub.s32 %s13, %s20
      %p90 = scmp.eq.s32.totalorder %s89, 0
      %s92 = sadd.s32 %s91, 1
      %s93 = scalar_select %p90, %s91, %s92
      %p96 = pneg %p90
      %p97 = scmp.eq.s32.totalorder %s13, 1
      %p98 = por %p96, %p97
      %p99 = scmp.ne.s32.totalorder %s91, %s94
      %p100 = scmp.eq.s32.totalorder %s13, 0
      %p101 = por %p99, %p100
      %p102 = scmp.ne.s32.totalorder %s91, %s94
      %p103 = scmp.eq.s32.totalorder %s18, 1
      %p104 = por %p102, %p103
      %p105 = scmp.ne.s32.totalorder %s94, %s95
      %p106 = scmp.eq.s32.totalorder %s18, 0
      %p107 = por %p105, %p106
      %p108 = scmp.ne.s32.totalorder %s94, %s95
      %p109 = scmp.eq.s32.totalorder %s19, 1
      %p110 = por %p108, %p109
      %p112 = scmp.ne.s32.totalorder %s95, %s111
      %p113 = scmp.eq.s32.totalorder %s19, 0
      %p114 = por %p112, %p113
      %p115 = scmp.le.s32.totalorder 1, %s13
      %p116 = scmp.lt.s32.totalorder %s13, 3
      %p117 = pnand %p115, %p116
      %p118 = pneg %p117
      // Predicated region
      $region9: #{linear_regression_forward.1} parent=5 // pred_check
        _
      $region10: #{linear_regression_forward.1} parent=5 // pred_check_branch
        %120 = sbr.rel (%p117) target = $region12
      $region11: #{linear_regression_forward.1} parent=5 // pred_region
        %s121 = ssub.s32 %s13, 1
        // Predicated region
        $region13: #{linear_regression_forward.1} parent=11 // pred_check
          %p122 = pneg %p60
        $region14: #{linear_regression_forward.1} parent=11 // pred_check_branch
          %124 = sbr.rel (%p122) target = $region16
        $region15: #{linear_regression_forward.1} parent=11 // pred_region
          _
        $region16: #{linear_regression_forward.1} parent=11 // pred_fallthru
          _
        // Predicated region
        $region17: #{linear_regression_forward.1} parent=11 // pred_check
          %p125 = pneg %p81
        $region18: #{linear_regression_forward.1} parent=11 // pred_check_branch
          %127 = sbr.rel (%p125) target = $region20
        $region19: #{linear_regression_forward.1} parent=11 // pred_region
          _
        $region20: #{linear_regression_forward.1} parent=11 // pred_fallthru
          _
      $region12: #{linear_regression_forward.1} parent=5 // pred_fallthru
        _
      %p128 = scmp.lt.s32.totalorder %s13, 2
      // Predicated region
      $region21: #{linear_regression_forward.1} parent=5 // pred_check
        %p129 = pneg %p128
      $region22: #{linear_regression_forward.1} parent=5 // pred_check_branch
        %131 = sbr.rel (%p129) target = $region24
      $region23: #{linear_regression_forward.1} parent=5 // pred_region
        // Predicated region
        $region25: #{linear_regression_forward.1} parent=23 // pred_check
          %p132 = pneg %p33
        $region26: #{linear_regression_forward.1} parent=23 // pred_check_branch
          %134 = sbr.rel (%p132) target = $region28
        $region27: #{linear_regression_forward.1} parent=23 // pred_region
          %p135 = scmp.lt.s32.totalorder %s13, 1
          %s136 = scalar_select %p135, %s13, 1
          %s137 = smul.addr %s136, 4
          %s138 = smul.addr %s137, 8
          %s139 = scalar_lea.vmem %s0, %s138
        $region28: #{linear_regression_forward.1} parent=23 // pred_fallthru
          _
      $region24: #{linear_regression_forward.1} parent=5 // pred_fallthru
        _
      %p140 = scmp.le.s32.totalorder 1, %s13
      %p141 = scmp.lt.s32.totalorder %s13, 3
      %p142 = pnand %p140, %p141
      %p143 = pneg %p142
      // Predicated region
      $region29: #{linear_regression_forward.1} parent=5 // pred_check
        _
      $region30: #{linear_regression_forward.1} parent=5 // pred_check_branch
        %145 = sbr.rel (%p142) target = $region32
      $region31: #{linear_regression_forward.1} parent=5 // pred_region
        %s146 = ssub.s32 %s13, 1
        %p147 = scmp.lt.s32.totalorder %s18, 1
        %s148 = scalar_select %p147, %s18, 1
        %s149 = smul.addr %s148, 4
        %s150 = smul.addr %s149, 8
        %s151 = scalar_lea.vmem %s0, %s150
        %p152 = pneg %p39
        %p153 = pneg %p36
        %p154 = pneg %p60
        %p155 = pneg %p57
        %p156 = pneg %p81
        %p157 = pneg %p78
        %p158 = pneg %p107
        %p159 = pneg %p104
        %s160 = sand.u32 %s94, 1
        %s161 = scalar_lea.sflag [#allocation4], %s160
        %s162 = sand.u32 %s94, 1
        %s163 = smul.addr %s162, 8
        %s164 = scalar_lea.vmem [#allocation3], %s163
        %p165 = scmp.lt.s32.totalorder %s18, 1
        %s166 = scalar_select %p165, %s18, 1
        %s167 = smul.addr %s166, 4
        %s168 = smul.addr %s167, 8
        %s169 = scalar_lea.vmem %s0, %s168
        %v170 = vld [vmem:[%s169] sm:$0xff]
        %v171 = vld [vmem:[%s169 + $0x8] sm:$0xff]
        %v172 = vld [vmem:[%s169 + $0x10] sm:$0xff]
        %v173 = vld [vmem:[%s169 + $0x18] sm:$0xff]
        %v174 = vld [vmem:[%s1] sm:$0xff]
        %v175 = vld [vmem:[%s1 + $0x8] sm:$0xff]
        %v176 = vld [vmem:[%s1 + $0x10] sm:$0xff]
        %v177 = vld [vmem:[%s1 + $0x18] sm:$0xff]
        %v178 = vld [vmem:[%s1 + $0x20] sm:$0xff]
        %v179 = vld [vmem:[%s1 + $0x28] sm:$0xff]
        %v180 = vld [vmem:[%s1 + $0x30] sm:$0xff]
        %v181 = vld [vmem:[%s1 + $0x38] sm:$0xff]
        %v182 = vld [vmem:[%s1 + $0x40] sm:$0xff]
        %v183 = vld [vmem:[%s1 + $0x48] sm:$0xff]
        %v184 = vld [vmem:[%s1 + $0x50] sm:$0xff]
        %v185 = vld [vmem:[%s1 + $0x58] sm:$0xff]
        %v186 = vld [vmem:[%s1 + $0x60] sm:$0xff]
        %v187 = vld [vmem:[%s1 + $0x68] sm:$0xff]
        %v188 = vld [vmem:[%s1 + $0x70] sm:$0xff]
        %v189 = vld [vmem:[%s1 + $0x78] sm:$0xff]
        %v190 = vld [vmem:[%s1 + $0x80] sm:$0xff]
        %v191 = vld [vmem:[%s1 + $0x88] sm:$0xff]
        %v192 = vld [vmem:[%s1 + $0x90] sm:$0xff]
        %v193 = vld [vmem:[%s1 + $0x98] sm:$0xff]
        %v194 = vld [vmem:[%s1 + $0xa0] sm:$0xff]
        %v195 = vld [vmem:[%s1 + $0xa8] sm:$0xff]
        %v196 = vld [vmem:[%s1 + $0xb0] sm:$0xff]
        %v197 = vld [vmem:[%s1 + $0xb8] sm:$0xff]
        %v198 = vld [vmem:[%s1 + $0xc0] sm:$0xff]
        %v199 = vld [vmem:[%s1 + $0xc8] sm:$0xff]
        %v200 = vld [vmem:[%s1 + $0xd0] sm:$0xff]
        %v201 = vld [vmem:[%s1 + $0xd8] sm:$0xff]
        %v202 = vld [vmem:[%s1 + $0xe0] sm:$0xff]
        %v203 = vld [vmem:[%s1 + $0xe8] sm:$0xff]
        %v204 = vld [vmem:[%s1 + $0xf0] sm:$0xff]
        %v205 = vld [vmem:[%s1 + $0xf8] sm:$0xff]
        %v206 = vld [vmem:[%s1 + $0x100] sm:$0xff]
        %v207 = vld [vmem:[%s1 + $0x108] sm:$0xff]
        %v208 = vld [vmem:[%s1 + $0x110] sm:$0xff]
        %v209 = vld [vmem:[%s1 + $0x118] sm:$0xff]
        %v210 = vld [vmem:[%s1 + $0x120] sm:$0xff]
        %v211 = vld [vmem:[%s1 + $0x128] sm:$0xff]
        %v212 = vld [vmem:[%s1 + $0x130] sm:$0xff]
        %v213 = vld [vmem:[%s1 + $0x138] sm:$0xff]
        %v214 = vld [vmem:[%s1 + $0x140] sm:$0xff]
        %v215 = vld [vmem:[%s1 + $0x148] sm:$0xff]
        %v216 = vld [vmem:[%s1 + $0x150] sm:$0xff]
        %v217 = vld [vmem:[%s1 + $0x158] sm:$0xff]
        %v218 = vld [vmem:[%s1 + $0x160] sm:$0xff]
        %v219 = vld [vmem:[%s1 + $0x168] sm:$0xff]
        %v220 = vld [vmem:[%s1 + $0x170] sm:$0xff]
        %v221 = vld [vmem:[%s1 + $0x178] sm:$0xff]
        %v222 = vld [vmem:[%s1 + $0x180] sm:$0xff]
        %v223 = vld [vmem:[%s1 + $0x188] sm:$0xff]
        %v224 = vld [vmem:[%s1 + $0x190] sm:$0xff]
        %v225 = vld [vmem:[%s1 + $0x198] sm:$0xff]
        %v226 = vld [vmem:[%s1 + $0x1a0] sm:$0xff]
        %v227 = vld [vmem:[%s1 + $0x1a8] sm:$0xff]
        %v228 = vld [vmem:[%s1 + $0x1b0] sm:$0xff]
        %v229 = vld [vmem:[%s1 + $0x1b8] sm:$0xff]
        %v230 = vld [vmem:[%s1 + $0x1c0] sm:$0xff]
        %v231 = vld [vmem:[%s1 + $0x1c8] sm:$0xff]
        %v232 = vld [vmem:[%s1 + $0x1d0] sm:$0xff]
        %v233 = vld [vmem:[%s1 + $0x1d8] sm:$0xff]
        %v234 = vld [vmem:[%s1 + $0x1e0] sm:$0xff]
        %v235 = vld [vmem:[%s1 + $0x1e8] sm:$0xff]
        %v236 = vld [vmem:[%s1 + $0x1f0] sm:$0xff]
        %v237 = vld [vmem:[%s1 + $0x1f8] sm:$0xff]
        %s238 = sld [smem:[#allocation2]]
        %v239 = vstv %s238
        %240 = vmatprep.subr.mxu0 0.0
        %v241 = vand.u32 %v189, 4294901760
        %242 = vmatpush1.msra.mxu0 %v241
        %243 = vmatprep.subr.mxu0 0.0
        %v244 = vand.u32 %v188, 4294901760
        %245 = vmatpush1.msra.mxu0 %v244
        %246 = vmatprep.subr.mxu0 0.0
        %v247 = vand.u32 %v187, 4294901760
        %248 = vmatpush1.msra.mxu0 %v247
        %249 = vmatprep.subr.mxu0 0.0
        %v250 = vand.u32 %v186, 4294901760
        %251 = vmatpush1.msra.mxu0 %v250
        %252 = vmatprep.subr.mxu0 0.0
        %v253 = vand.u32 %v185, 4294901760
        %254 = vmatpush1.msra.mxu0 %v253
        %255 = vmatprep.subr.mxu0 0.0
        %v256 = vand.u32 %v184, 4294901760
        %257 = vmatpush1.msra.mxu0 %v256
        %258 = vmatprep.subr.mxu0 0.0
        %v259 = vand.u32 %v183, 4294901760
        %260 = vmatpush1.msra.mxu0 %v259
        %261 = vmatprep.subr.mxu0 0.0
        %v262 = vand.u32 %v182, 4294901760
        %263 = vmatpush1.msra.mxu0 %v262
        %264 = vmatprep.subr.mxu0 0.0
        %v265 = vand.u32 %v181, 4294901760
        %266 = vmatpush1.msra.mxu0 %v265
        %267 = vmatprep.subr.mxu0 0.0
        %v268 = vand.u32 %v180, 4294901760
        %269 = vmatpush1.msra.mxu0 %v268
        %270 = vmatprep.subr.mxu0 0.0
        %v271 = vand.u32 %v179, 4294901760
        %272 = vmatpush1.msra.mxu0 %v271
        %273 = vmatprep.subr.mxu0 0.0
        %v274 = vand.u32 %v178, 4294901760
        %275 = vmatpush1.msra.mxu0 %v274
        %276 = vmatprep.subr.mxu0 0.0
        %v277 = vand.u32 %v177, 4294901760
        %278 = vmatpush1.msra.mxu0 %v277
        %279 = vmatprep.subr.mxu0 0.0
        %v280 = vand.u32 %v176, 4294901760
        %281 = vmatpush1.msra.mxu0 %v280
        %282 = vmatprep.subr.mxu0 0.0
        %v283 = vand.u32 %v175, 4294901760
        %284 = vmatpush1.msra.mxu0 %v283
        %285 = vmatprep.subr.mxu0 0.0
        %v286 = vand.u32 %v174, 4294901760
        %287 = vmatpush1.msra.mxu0 %v286
        %288 = vmatprep.subr.mxu0 0.0
        %v289 = vand.u32 %v205, 4294901760
        %290 = vmatpush2.msra.mxu0 %v289
        %291 = vmatprep.subr.mxu0 0.0
        %v292 = vand.u32 %v204, 4294901760
        %293 = vmatpush2.msra.mxu0 %v292
        %294 = vmatprep.subr.mxu0 0.0
        %v295 = vand.u32 %v203, 4294901760
        %296 = vmatpush2.msra.mxu0 %v295
        %297 = vmatprep.subr.mxu0 0.0
        %v298 = vand.u32 %v202, 4294901760
        %299 = vmatpush2.msra.mxu0 %v298
        %300 = vmatprep.subr.mxu0 0.0
        %v301 = vand.u32 %v201, 4294901760
        %302 = vmatpush2.msra.mxu0 %v301
        %303 = vmatprep.subr.mxu0 0.0
        %v304 = vand.u32 %v200, 4294901760
        %305 = vmatpush2.msra.mxu0 %v304
        %306 = vmatprep.subr.mxu0 0.0
        %v307 = vand.u32 %v199, 4294901760
        %308 = vmatpush2.msra.mxu0 %v307
        %309 = vmatprep.subr.mxu0 0.0
        %v310 = vand.u32 %v198, 4294901760
        %311 = vmatpush2.msra.mxu0 %v310
        %312 = vmatprep.subr.mxu0 0.0
        %v313 = vand.u32 %v197, 4294901760
        %314 = vmatpush2.msra.mxu0 %v313
        %315 = vmatprep.subr.mxu0 0.0
        %v316 = vand.u32 %v196, 4294901760
        %317 = vmatpush2.msra.mxu0 %v316
        %318 = vmatprep.subr.mxu0 0.0
        %v319 = vand.u32 %v195, 4294901760
        %320 = vmatpush2.msra.mxu0 %v319
        %321 = vmatprep.subr.mxu0 0.0
        %v322 = vand.u32 %v194, 4294901760
        %323 = vmatpush2.msra.mxu0 %v322
        %324 = vmatprep.subr.mxu0 0.0
        %v325 = vand.u32 %v193, 4294901760
        %326 = vmatpush2.msra.mxu0 %v325
        %327 = vmatprep.subr.mxu0 0.0
        %v328 = vand.u32 %v192, 4294901760
        %329 = vmatpush2.msra.mxu0 %v328
        %330 = vmatprep.subr.mxu0 0.0
        %v331 = vand.u32 %v191, 4294901760
        %332 = vmatpush2.msra.mxu0 %v331
        %333 = vmatprep.subr.mxu0 0.0
        %v334 = vand.u32 %v190, 4294901760
        %335 = vmatpush2.msra.mxu0 %v334
        %v336 = vand.u32 %v171, 4294901760
        %v337 = vsub.f32 %v171, %v336
        %v338 = vand.u32 %v337, 4294901760
        %v339 = vsub.f32 %v337, %v338
        %v340 = vand.u32 %v339, 4294901760
        %341 = vmatprep.mubr.f32.mxu0 %v340
        %v342 = vand.u32 %v170, 4294901760
        %v343 = vsub.f32 %v170, %v342
        %v344 = vand.u32 %v343, 4294901760
        %v345 = vsub.f32 %v343, %v344
        %v346 = vand.u32 %v345, 4294901760
        %347 = vmatmul.mubr.f32.gmra.mxu0 %v346
        %v348 = vpop.f32.mrf.mxu0
        %v349 = vadd.f32 %v239, %v348
        %v350 = vpop.f32.mrf.mxu0
        %351 = vdwg.mxu0
        %352 = vmatprep.subr.mxu0 0.0
        %v353 = vand.u32 %v189, 4294901760
        %v354 = vsub.f32 %v189, %v353
        %v355 = vand.u32 %v354, 4294901760
        %v356 = vsub.f32 %v354, %v355
        %v357 = vand.u32 %v356, 4294901760
        %358 = vmatpush1.msra.mxu0 %v357
        %359 = vmatprep.subr.mxu0 0.0
        %v360 = vand.u32 %v188, 4294901760
        %v361 = vsub.f32 %v188, %v360
        %v362 = vand.u32 %v361, 4294901760
        %v363 = vsub.f32 %v361, %v362
        %v364 = vand.u32 %v363, 4294901760
        %365 = vmatpush1.msra.mxu0 %v364
        %366 = vmatprep.subr.mxu0 0.0
        %v367 = vand.u32 %v187, 4294901760
        %v368 = vsub.f32 %v187, %v367
        %v369 = vand.u32 %v368, 4294901760
        %v370 = vsub.f32 %v368, %v369
        %v371 = vand.u32 %v370, 4294901760
        %372 = vmatpush1.msra.mxu0 %v371
        %373 = vmatprep.subr.mxu0 0.0
        %v374 = vand.u32 %v186, 4294901760
        %v375 = vsub.f32 %v186, %v374
        %v376 = vand.u32 %v375, 4294901760
        %v377 = vsub.f32 %v375, %v376
        %v378 = vand.u32 %v377, 4294901760
        %379 = vmatpush1.msra.mxu0 %v378
        %380 = vmatprep.subr.mxu0 0.0
        %v381 = vand.u32 %v185, 4294901760
        %v382 = vsub.f32 %v185, %v381
        %v383 = vand.u32 %v382, 4294901760
        %v384 = vsub.f32 %v382, %v383
        %v385 = vand.u32 %v384, 4294901760
        %386 = vmatpush1.msra.mxu0 %v385
        %387 = vmatprep.subr.mxu0 0.0
        %v388 = vand.u32 %v184, 4294901760
        %v389 = vsub.f32 %v184, %v388
        %v390 = vand.u32 %v389, 4294901760
        %v391 = vsub.f32 %v389, %v390
        %v392 = vand.u32 %v391, 4294901760
        %393 = vmatpush1.msra.mxu0 %v392
        %394 = vmatprep.subr.mxu0 0.0
        %v395 = vand.u32 %v183, 4294901760
        %v396 = vsub.f32 %v183, %v395
        %v397 = vand.u32 %v396, 4294901760
        %v398 = vsub.f32 %v396, %v397
        %v399 = vand.u32 %v398, 4294901760
        %400 = vmatpush1.msra.mxu0 %v399
        %401 = vmatprep.subr.mxu0 0.0
        %v402 = vand.u32 %v182, 4294901760
        %v403 = vsub.f32 %v182, %v402
        %v404 = vand.u32 %v403, 4294901760
        %v405 = vsub.f32 %v403, %v404
        %v406 = vand.u32 %v405, 4294901760
        %407 = vmatpush1.msra.mxu0 %v406
        %408 = vmatprep.subr.mxu0 0.0
        %v409 = vand.u32 %v181, 4294901760
        %v410 = vsub.f32 %v181, %v409
        %v411 = vand.u32 %v410, 4294901760
        %v412 = vsub.f32 %v410, %v411
        %v413 = vand.u32 %v412, 4294901760
        %414 = vmatpush1.msra.mxu0 %v413
        %415 = vmatprep.subr.mxu0 0.0
        %v416 = vand.u32 %v180, 4294901760
        %v417 = vsub.f32 %v180, %v416
        %v418 = vand.u32 %v417, 4294901760
        %v419 = vsub.f32 %v417, %v418
        %v420 = vand.u32 %v419, 4294901760
        %421 = vmatpush1.msra.mxu0 %v420
        %422 = vmatprep.subr.mxu0 0.0
        %v423 = vand.u32 %v179, 4294901760
        %v424 = vsub.f32 %v179, %v423
        %v425 = vand.u32 %v424, 4294901760
        %v426 = vsub.f32 %v424, %v425
        %v427 = vand.u32 %v426, 4294901760
        %428 = vmatpush1.msra.mxu0 %v427
        %429 = vmatprep.subr.mxu0 0.0
        %v430 = vand.u32 %v178, 4294901760
        %v431 = vsub.f32 %v178, %v430
        %v432 = vand.u32 %v431, 4294901760
        %v433 = vsub.f32 %v431, %v432
        %v434 = vand.u32 %v433, 4294901760
        %435 = vmatpush1.msra.mxu0 %v434
        %436 = vmatprep.subr.mxu0 0.0
        %v437 = vand.u32 %v177, 4294901760
        %v438 = vsub.f32 %v177, %v437
        %v439 = vand.u32 %v438, 4294901760
        %v440 = vsub.f32 %v438, %v439
        %v441 = vand.u32 %v440, 4294901760
        %442 = vmatpush1.msra.mxu0 %v441
        %443 = vmatprep.subr.mxu0 0.0
        %v444 = vand.u32 %v176, 4294901760
        %v445 = vsub.f32 %v176, %v444
        %v446 = vand.u32 %v445, 4294901760
        %v447 = vsub.f32 %v445, %v446
        %v448 = vand.u32 %v447, 4294901760
        %449 = vmatpush1.msra.mxu0 %v448
        %450 = vmatprep.subr.mxu0 0.0
        %v451 = vand.u32 %v175, 4294901760
        %v452 = vsub.f32 %v175, %v451
        %v453 = vand.u32 %v452, 4294901760
        %v454 = vsub.f32 %v452, %v453
        %v455 = vand.u32 %v454, 4294901760
        %456 = vmatpush1.msra.mxu0 %v455
        %457 = vmatprep.subr.mxu0 0.0
        %v458 = vand.u32 %v174, 4294901760
        %v459 = vsub.f32 %v174, %v458
        %v460 = vand.u32 %v459, 4294901760
        %v461 = vsub.f32 %v459, %v460
        %v462 = vand.u32 %v461, 4294901760
        %463 = vmatpush1.msra.mxu0 %v462
        %464 = vmatprep.subr.mxu0 0.0
        %v465 = vand.u32 %v205, 4294901760
        %v466 = vsub.f32 %v205, %v465
        %v467 = vand.u32 %v466, 4294901760
        %v468 = vsub.f32 %v466, %v467
        %v469 = vand.u32 %v468, 4294901760
        %470 = vmatpush2.msra.mxu0 %v469
        %471 = vmatprep.subr.mxu0 0.0
        %v472 = vand.u32 %v204, 4294901760
        %v473 = vsub.f32 %v204, %v472
        %v474 = vand.u32 %v473, 4294901760
        %v475 = vsub.f32 %v473, %v474
        %v476 = vand.u32 %v475, 4294901760
        %477 = vmatpush2.msra.mxu0 %v476
        %478 = vmatprep.subr.mxu0 0.0
        %v479 = vand.u32 %v203, 4294901760
        %v480 = vsub.f32 %v203, %v479
        %v481 = vand.u32 %v480, 4294901760
        %v482 = vsub.f32 %v480, %v481
        %v483 = vand.u32 %v482, 4294901760
        %484 = vmatpush2.msra.mxu0 %v483
        %485 = vmatprep.subr.mxu0 0.0
        %v486 = vand.u32 %v202, 4294901760
        %v487 = vsub.f32 %v202, %v486
        %v488 = vand.u32 %v487, 4294901760
        %v489 = vsub.f32 %v487, %v488
        %v490 = vand.u32 %v489, 4294901760
        %491 = vmatpush2.msra.mxu0 %v490
        %492 = vmatprep.subr.mxu0 0.0
        %v493 = vand.u32 %v201, 4294901760
        %v494 = vsub.f32 %v201, %v493
        %v495 = vand.u32 %v494, 4294901760
        %v496 = vsub.f32 %v494, %v495
        %v497 = vand.u32 %v496, 4294901760
        %498 = vmatpush2.msra.mxu0 %v497
        %499 = vmatprep.subr.mxu0 0.0
        %v500 = vand.u32 %v200, 4294901760
        %v501 = vsub.f32 %v200, %v500
        %v502 = vand.u32 %v501, 4294901760
        %v503 = vsub.f32 %v501, %v502
        %v504 = vand.u32 %v503, 4294901760
        %505 = vmatpush2.msra.mxu0 %v504
        %506 = vmatprep.subr.mxu0 0.0
        %v507 = vand.u32 %v199, 4294901760
        %v508 = vsub.f32 %v199, %v507
        %v509 = vand.u32 %v508, 4294901760
        %v510 = vsub.f32 %v508, %v509
        %v511 = vand.u32 %v510, 4294901760
        %512 = vmatpush2.msra.mxu0 %v511
        %513 = vmatprep.subr.mxu0 0.0
        %v514 = vand.u32 %v198, 4294901760
        %v515 = vsub.f32 %v198, %v514
        %v516 = vand.u32 %v515, 4294901760
        %v517 = vsub.f32 %v515, %v516
        %v518 = vand.u32 %v517, 4294901760
        %519 = vmatpush2.msra.mxu0 %v518
        %520 = vmatprep.subr.mxu0 0.0
        %v521 = vand.u32 %v197, 4294901760
        %v522 = vsub.f32 %v197, %v521
        %v523 = vand.u32 %v522, 4294901760
        %v524 = vsub.f32 %v522, %v523
        %v525 = vand.u32 %v524, 4294901760
        %526 = vmatpush2.msra.mxu0 %v525
        %527 = vmatprep.subr.mxu0 0.0
        %v528 = vand.u32 %v196, 4294901760
        %v529 = vsub.f32 %v196, %v528
        %v530 = vand.u32 %v529, 4294901760
        %v531 = vsub.f32 %v529, %v530
        %v532 = vand.u32 %v531, 4294901760
        %533 = vmatpush2.msra.mxu0 %v532
        %534 = vmatprep.subr.mxu0 0.0
        %v535 = vand.u32 %v195, 4294901760
        %v536 = vsub.f32 %v195, %v535
        %v537 = vand.u32 %v536, 4294901760
        %v538 = vsub.f32 %v536, %v537
        %v539 = vand.u32 %v538, 4294901760
        %540 = vmatpush2.msra.mxu0 %v539
        %541 = vmatprep.subr.mxu0 0.0
        %v542 = vand.u32 %v194, 4294901760
        %v543 = vsub.f32 %v194, %v542
        %v544 = vand.u32 %v543, 4294901760
        %v545 = vsub.f32 %v543, %v544
        %v546 = vand.u32 %v545, 4294901760
        %547 = vmatpush2.msra.mxu0 %v546
        %548 = vmatprep.subr.mxu0 0.0
        %v549 = vand.u32 %v193, 4294901760
        %v550 = vsub.f32 %v193, %v549
        %v551 = vand.u32 %v550, 4294901760
        %v552 = vsub.f32 %v550, %v551
        %v553 = vand.u32 %v552, 4294901760
        %554 = vmatpush2.msra.mxu0 %v553
        %555 = vmatprep.subr.mxu0 0.0
        %v556 = vand.u32 %v192, 4294901760
        %v557 = vsub.f32 %v192, %v556
        %v558 = vand.u32 %v557, 4294901760
        %v559 = vsub.f32 %v557, %v558
        %v560 = vand.u32 %v559, 4294901760
        %561 = vmatpush2.msra.mxu0 %v560
        %562 = vmatprep.subr.mxu0 0.0
        %v563 = vand.u32 %v191, 4294901760
        %v564 = vsub.f32 %v191, %v563
        %v565 = vand.u32 %v564, 4294901760
        %v566 = vsub.f32 %v564, %v565
        %v567 = vand.u32 %v566, 4294901760
        %568 = vmatpush2.msra.mxu0 %v567
        %569 = vmatprep.subr.mxu0 0.0
        %v570 = vand.u32 %v190, 4294901760
        %v571 = vsub.f32 %v190, %v570
        %v572 = vand.u32 %v571, 4294901760
        %v573 = vsub.f32 %v571, %v572
        %v574 = vand.u32 %v573, 4294901760
        %575 = vmatpush2.msra.mxu0 %v574
        %v576 = vand.u32 %v171, 4294901760
        %577 = vmatprep.mubr.f32.mxu0 %v576
        %v578 = vand.u32 %v170, 4294901760
        %579 = vmatmul.mubr.f32.gmra.mxu0 %v578
        %v580 = vpop.f32.mrf.mxu0
        %v581 = vadd.f32 %v349, %v580
        %v582 = vpop.f32.mrf.mxu0
        %583 = vdwg.mxu0
        %584 = vmatprep.subr.mxu0 0.0
        %v585 = vand.u32 %v189, 4294901760
        %v586 = vsub.f32 %v189, %v585
        %587 = vmatpush1.msra.mxu0 %v586
        %588 = vmatprep.subr.mxu0 0.0
        %v589 = vand.u32 %v188, 4294901760
        %v590 = vsub.f32 %v188, %v589
        %591 = vmatpush1.msra.mxu0 %v590
        %592 = vmatprep.subr.mxu0 0.0
        %v593 = vand.u32 %v187, 4294901760
        %v594 = vsub.f32 %v187, %v593
        %595 = vmatpush1.msra.mxu0 %v594
        %596 = vmatprep.subr.mxu0 0.0
        %v597 = vand.u32 %v186, 4294901760
        %v598 = vsub.f32 %v186, %v597
        %599 = vmatpush1.msra.mxu0 %v598
        %600 = vmatprep.subr.mxu0 0.0
        %v601 = vand.u32 %v185, 4294901760
        %v602 = vsub.f32 %v185, %v601
        %603 = vmatpush1.msra.mxu0 %v602
        %604 = vmatprep.subr.mxu0 0.0
        %v605 = vand.u32 %v184, 4294901760
        %v606 = vsub.f32 %v184, %v605
        %607 = vmatpush1.msra.mxu0 %v606
        %608 = vmatprep.subr.mxu0 0.0
        %v609 = vand.u32 %v183, 4294901760
        %v610 = vsub.f32 %v183, %v609
        %611 = vmatpush1.msra.mxu0 %v610
        %612 = vmatprep.subr.mxu0 0.0
        %v613 = vand.u32 %v182, 4294901760
        %v614 = vsub.f32 %v182, %v613
        %615 = vmatpush1.msra.mxu0 %v614
        %616 = vmatprep.subr.mxu0 0.0
        %v617 = vand.u32 %v181, 4294901760
        %v618 = vsub.f32 %v181, %v617
        %619 = vmatpush1.msra.mxu0 %v618
        %620 = vmatprep.subr.mxu0 0.0
        %v621 = vand.u32 %v180, 4294901760
        %v622 = vsub.f32 %v180, %v621
        %623 = vmatpush1.msra.mxu0 %v622
        %624 = vmatprep.subr.mxu0 0.0
        %v625 = vand.u32 %v179, 4294901760
        %v626 = vsub.f32 %v179, %v625
        %627 = vmatpush1.msra.mxu0 %v626
        %628 = vmatprep.subr.mxu0 0.0
        %v629 = vand.u32 %v178, 4294901760
        %v630 = vsub.f32 %v178, %v629
        %631 = vmatpush1.msra.mxu0 %v630
        %632 = vmatprep.subr.mxu0 0.0
        %v633 = vand.u32 %v177, 4294901760
        %v634 = vsub.f32 %v177, %v633
        %635 = vmatpush1.msra.mxu0 %v634
        %636 = vmatprep.subr.mxu0 0.0
        %v637 = vand.u32 %v176, 4294901760
        %v638 = vsub.f32 %v176, %v637
        %639 = vmatpush1.msra.mxu0 %v638
        %640 = vmatprep.subr.mxu0 0.0
        %v641 = vand.u32 %v175, 4294901760
        %v642 = vsub.f32 %v175, %v641
        %643 = vmatpush1.msra.mxu0 %v642
        %644 = vmatprep.subr.mxu0 0.0
        %v645 = vand.u32 %v174, 4294901760
        %v646 = vsub.f32 %v174, %v645
        %647 = vmatpush1.msra.mxu0 %v646
        %648 = vmatprep.subr.mxu0 0.0
        %v649 = vand.u32 %v205, 4294901760
        %v650 = vsub.f32 %v205, %v649
        %651 = vmatpush2.msra.mxu0 %v650
        %652 = vmatprep.subr.mxu0 0.0
        %v653 = vand.u32 %v204, 4294901760
        %v654 = vsub.f32 %v204, %v653
        %655 = vmatpush2.msra.mxu0 %v654
        %656 = vmatprep.subr.mxu0 0.0
        %v657 = vand.u32 %v203, 4294901760
        %v658 = vsub.f32 %v203, %v657
        %659 = vmatpush2.msra.mxu0 %v658
        %660 = vmatprep.subr.mxu0 0.0
        %v661 = vand.u32 %v202, 4294901760
        %v662 = vsub.f32 %v202, %v661
        %663 = vmatpush2.msra.mxu0 %v662
        %664 = vmatprep.subr.mxu0 0.0
        %v665 = vand.u32 %v201, 4294901760
        %v666 = vsub.f32 %v201, %v665
        %667 = vmatpush2.msra.mxu0 %v666
        %668 = vmatprep.subr.mxu0 0.0
        %v669 = vand.u32 %v200, 4294901760
        %v670 = vsub.f32 %v200, %v669
        %671 = vmatpush2.msra.mxu0 %v670
        %672 = vmatprep.subr.mxu0 0.0
        %v673 = vand.u32 %v199, 4294901760
        %v674 = vsub.f32 %v199, %v673
        %675 = vmatpush2.msra.mxu0 %v674
        %676 = vmatprep.subr.mxu0 0.0
        %v677 = vand.u32 %v198, 4294901760
        %v678 = vsub.f32 %v198, %v677
        %679 = vmatpush2.msra.mxu0 %v678
        %680 = vmatprep.subr.mxu0 0.0
        %v681 = vand.u32 %v197, 4294901760
        %v682 = vsub.f32 %v197, %v681
        %683 = vmatpush2.msra.mxu0 %v682
        %684 = vmatprep.subr.mxu0 0.0
        %v685 = vand.u32 %v196, 4294901760
        %v686 = vsub.f32 %v196, %v685
        %687 = vmatpush2.msra.mxu0 %v686
        %688 = vmatprep.subr.mxu0 0.0
        %v689 = vand.u32 %v195, 4294901760
        %v690 = vsub.f32 %v195, %v689
        %691 = vmatpush2.msra.mxu0 %v690
        %692 = vmatprep.subr.mxu0 0.0
        %v693 = vand.u32 %v194, 4294901760
        %v694 = vsub.f32 %v194, %v693
        %695 = vmatpush2.msra.mxu0 %v694
        %696 = vmatprep.subr.mxu0 0.0
        %v697 = vand.u32 %v193, 4294901760
        %v698 = vsub.f32 %v193, %v697
        %699 = vmatpush2.msra.mxu0 %v698
        %700 = vmatprep.subr.mxu0 0.0
        %v701 = vand.u32 %v192, 4294901760
        %v702 = vsub.f32 %v192, %v701
        %703 = vmatpush2.msra.mxu0 %v702
        %704 = vmatprep.subr.mxu0 0.0
        %v705 = vand.u32 %v191, 4294901760
        %v706 = vsub.f32 %v191, %v705
        %707 = vmatpush2.msra.mxu0 %v706
        %708 = vmatprep.subr.mxu0 0.0
        %v709 = vand.u32 %v190, 4294901760
        %v710 = vsub.f32 %v190, %v709
        %711 = vmatpush2.msra.mxu0 %v710
        %v712 = vand.u32 %v171, 4294901760
        %v713 = vsub.f32 %v171, %v712
        %714 = vmatprep.mubr.f32.mxu0 %v713
        %v715 = vand.u32 %v170, 4294901760
        %v716 = vsub.f32 %v170, %v715
        %717 = vmatmul.mubr.f32.gmra.mxu0 %v716
        %v718 = vpop.f32.mrf.mxu0
        %v719 = vadd.f32 %v581, %v718
        %v720 = vpop.f32.mrf.mxu0
        %721 = vdwg.mxu0
        %722 = vmatprep.subr.mxu0 0.0
        %v723 = vand.u32 %v189, 4294901760
        %724 = vmatpush1.msra.mxu0 %v723
        %725 = vmatprep.subr.mxu0 0.0
        %v726 = vand.u32 %v188, 4294901760
        %727 = vmatpush1.msra.mxu0 %v726
        %728 = vmatprep.subr.mxu0 0.0
        %v729 = vand.u32 %v187, 4294901760
        %730 = vmatpush1.msra.mxu0 %v729
        %731 = vmatprep.subr.mxu0 0.0
        %v732 = vand.u32 %v186, 4294901760
        %733 = vmatpush1.msra.mxu0 %v732
        %734 = vmatprep.subr.mxu0 0.0
        %v735 = vand.u32 %v185, 4294901760
        %736 = vmatpush1.msra.mxu0 %v735
        %737 = vmatprep.subr.mxu0 0.0
        %v738 = vand.u32 %v184, 4294901760
        %739 = vmatpush1.msra.mxu0 %v738
        %740 = vmatprep.subr.mxu0 0.0
        %v741 = vand.u32 %v183, 4294901760
        %742 = vmatpush1.msra.mxu0 %v741
        %743 = vmatprep.subr.mxu0 0.0
        %v744 = vand.u32 %v182, 4294901760
        %745 = vmatpush1.msra.mxu0 %v744
        %746 = vmatprep.subr.mxu0 0.0
        %v747 = vand.u32 %v181, 4294901760
        %748 = vmatpush1.msra.mxu0 %v747
        %749 = vmatprep.subr.mxu0 0.0
        %v750 = vand.u32 %v180, 4294901760
        %751 = vmatpush1.msra.mxu0 %v750
        %752 = vmatprep.subr.mxu0 0.0
        %v753 = vand.u32 %v179, 4294901760
        %754 = vmatpush1.msra.mxu0 %v753
        %755 = vmatprep.subr.mxu0 0.0
        %v756 = vand.u32 %v178, 4294901760
        %757 = vmatpush1.msra.mxu0 %v756
        %758 = vmatprep.subr.mxu0 0.0
        %v759 = vand.u32 %v177, 4294901760
        %760 = vmatpush1.msra.mxu0 %v759
        %761 = vmatprep.subr.mxu0 0.0
        %v762 = vand.u32 %v176, 4294901760
        %763 = vmatpush1.msra.mxu0 %v762
        %764 = vmatprep.subr.mxu0 0.0
        %v765 = vand.u32 %v175, 4294901760
        %766 = vmatpush1.msra.mxu0 %v765
        %767 = vmatprep.subr.mxu0 0.0
        %v768 = vand.u32 %v174, 4294901760
        %769 = vmatpush1.msra.mxu0 %v768
        %770 = vmatprep.subr.mxu0 0.0
        %v771 = vand.u32 %v205, 4294901760
        %772 = vmatpush2.msra.mxu0 %v771
        %773 = vmatprep.subr.mxu0 0.0
        %v774 = vand.u32 %v204, 4294901760
        %775 = vmatpush2.msra.mxu0 %v774
        %776 = vmatprep.subr.mxu0 0.0
        %v777 = vand.u32 %v203, 4294901760
        %778 = vmatpush2.msra.mxu0 %v777
        %779 = vmatprep.subr.mxu0 0.0
        %v780 = vand.u32 %v202, 4294901760
        %781 = vmatpush2.msra.mxu0 %v780
        %782 = vmatprep.subr.mxu0 0.0
        %v783 = vand.u32 %v201, 4294901760
        %784 = vmatpush2.msra.mxu0 %v783
        %785 = vmatprep.subr.mxu0 0.0
        %v786 = vand.u32 %v200, 4294901760
        %787 = vmatpush2.msra.mxu0 %v786
        %788 = vmatprep.subr.mxu0 0.0
        %v789 = vand.u32 %v199, 4294901760
        %790 = vmatpush2.msra.mxu0 %v789
        %791 = vmatprep.subr.mxu0 0.0
        %v792 = vand.u32 %v198, 4294901760
        %793 = vmatpush2.msra.mxu0 %v792
        %794 = vmatprep.subr.mxu0 0.0
        %v795 = vand.u32 %v197, 4294901760
        %796 = vmatpush2.msra.mxu0 %v795
        %797 = vmatprep.subr.mxu0 0.0
        %v798 = vand.u32 %v196, 4294901760
        %799 = vmatpush2.msra.mxu0 %v798
        %800 = vmatprep.subr.mxu0 0.0
        %v801 = vand.u32 %v195, 4294901760
        %802 = vmatpush2.msra.mxu0 %v801
        %803 = vmatprep.subr.mxu0 0.0
        %v804 = vand.u32 %v194, 4294901760
        %805 = vmatpush2.msra.mxu0 %v804
        %806 = vmatprep.subr.mxu0 0.0
        %v807 = vand.u32 %v193, 4294901760
        %808 = vmatpush2.msra.mxu0 %v807
        %809 = vmatprep.subr.mxu0 0.0
        %v810 = vand.u32 %v192, 4294901760
        %811 = vmatpush2.msra.mxu0 %v810
        %812 = vmatprep.subr.mxu0 0.0
        %v813 = vand.u32 %v191, 4294901760
        %814 = vmatpush2.msra.mxu0 %v813
        %815 = vmatprep.subr.mxu0 0.0
        %v816 = vand.u32 %v190, 4294901760
        %817 = vmatpush2.msra.mxu0 %v816
        %v818 = vand.u32 %v171, 4294901760
        %v819 = vsub.f32 %v171, %v818
        %v820 = vand.u32 %v819, 4294901760
        %821 = vmatprep.mubr.f32.mxu0 %v820
        %v822 = vand.u32 %v170, 4294901760
        %v823 = vsub.f32 %v170, %v822
        %v824 = vand.u32 %v823, 4294901760
        %825 = vmatmul.mubr.f32.gmra.mxu0 %v824
        %v826 = vpop.f32.mrf.mxu0
        %v827 = vadd.f32 %v719, %v826
        %v828 = vpop.f32.mrf.mxu0
        %829 = vdwg.mxu0
        %830 = vmatprep.subr.mxu0 0.0
        %v831 = vand.u32 %v189, 4294901760
        %v832 = vsub.f32 %v189, %v831
        %v833 = vand.u32 %v832, 4294901760
        %834 = vmatpush1.msra.mxu0 %v833
        %835 = vmatprep.subr.mxu0 0.0
        %v836 = vand.u32 %v188, 4294901760
        %v837 = vsub.f32 %v188, %v836
        %v838 = vand.u32 %v837, 4294901760
        %839 = vmatpush1.msra.mxu0 %v838
        %840 = vmatprep.subr.mxu0 0.0
        %v841 = vand.u32 %v187, 4294901760
        %v842 = vsub.f32 %v187, %v841
        %v843 = vand.u32 %v842, 4294901760
        %844 = vmatpush1.msra.mxu0 %v843
        %845 = vmatprep.subr.mxu0 0.0
        %v846 = vand.u32 %v186, 4294901760
        %v847 = vsub.f32 %v186, %v846
        %v848 = vand.u32 %v847, 4294901760
        %849 = vmatpush1.msra.mxu0 %v848
        %850 = vmatprep.subr.mxu0 0.0
        %v851 = vand.u32 %v185, 4294901760
        %v852 = vsub.f32 %v185, %v851
        %v853 = vand.u32 %v852, 4294901760
        %854 = vmatpush1.msra.mxu0 %v853
        %855 = vmatprep.subr.mxu0 0.0
        %v856 = vand.u32 %v184, 4294901760
        %v857 = vsub.f32 %v184, %v856
        %v858 = vand.u32 %v857, 4294901760
        %859 = vmatpush1.msra.mxu0 %v858
        %860 = vmatprep.subr.mxu0 0.0
        %v861 = vand.u32 %v183, 4294901760
        %v862 = vsub.f32 %v183, %v861
        %v863 = vand.u32 %v862, 4294901760
        %864 = vmatpush1.msra.mxu0 %v863
        %865 = vmatprep.subr.mxu0 0.0
        %v866 = vand.u32 %v182, 4294901760
        %v867 = vsub.f32 %v182, %v866
        %v868 = vand.u32 %v867, 4294901760
        %869 = vmatpush1.msra.mxu0 %v868
        %870 = vmatprep.subr.mxu0 0.0
        %v871 = vand.u32 %v181, 4294901760
        %v872 = vsub.f32 %v181, %v871
        %v873 = vand.u32 %v872, 4294901760
        %874 = vmatpush1.msra.mxu0 %v873
        %875 = vmatprep.subr.mxu0 0.0
        %v876 = vand.u32 %v180, 4294901760
        %v877 = vsub.f32 %v180, %v876
        %v878 = vand.u32 %v877, 4294901760
        %879 = vmatpush1.msra.mxu0 %v878
        %880 = vmatprep.subr.mxu0 0.0
        %v881 = vand.u32 %v179, 4294901760
        %v882 = vsub.f32 %v179, %v881
        %v883 = vand.u32 %v882, 4294901760
        %884 = vmatpush1.msra.mxu0 %v883
        %885 = vmatprep.subr.mxu0 0.0
        %v886 = vand.u32 %v178, 4294901760
        %v887 = vsub.f32 %v178, %v886
        %v888 = vand.u32 %v887, 4294901760
        %889 = vmatpush1.msra.mxu0 %v888
        %890 = vmatprep.subr.mxu0 0.0
        %v891 = vand.u32 %v177, 4294901760
        %v892 = vsub.f32 %v177, %v891
        %v893 = vand.u32 %v892, 4294901760
        %894 = vmatpush1.msra.mxu0 %v893
        %895 = vmatprep.subr.mxu0 0.0
        %v896 = vand.u32 %v176, 4294901760
        %v897 = vsub.f32 %v176, %v896
        %v898 = vand.u32 %v897, 4294901760
        %899 = vmatpush1.msra.mxu0 %v898
        %900 = vmatprep.subr.mxu0 0.0
        %v901 = vand.u32 %v175, 4294901760
        %v902 = vsub.f32 %v175, %v901
        %v903 = vand.u32 %v902, 4294901760
        %904 = vmatpush1.msra.mxu0 %v903
        %905 = vmatprep.subr.mxu0 0.0
        %v906 = vand.u32 %v174, 4294901760
        %v907 = vsub.f32 %v174, %v906
        %v908 = vand.u32 %v907, 4294901760
        %909 = vmatpush1.msra.mxu0 %v908
        %910 = vmatprep.subr.mxu0 0.0
        %v911 = vand.u32 %v205, 4294901760
        %v912 = vsub.f32 %v205, %v911
        %v913 = vand.u32 %v912, 4294901760
        %914 = vmatpush2.msra.mxu0 %v913
        %915 = vmatprep.subr.mxu0 0.0
        %v916 = vand.u32 %v204, 4294901760
        %v917 = vsub.f32 %v204, %v916
        %v918 = vand.u32 %v917, 4294901760
        %919 = vmatpush2.msra.mxu0 %v918
        %920 = vmatprep.subr.mxu0 0.0
        %v921 = vand.u32 %v203, 4294901760
        %v922 = vsub.f32 %v203, %v921
        %v923 = vand.u32 %v922, 4294901760
        %924 = vmatpush2.msra.mxu0 %v923
        %925 = vmatprep.subr.mxu0 0.0
        %v926 = vand.u32 %v202, 4294901760
        %v927 = vsub.f32 %v202, %v926
        %v928 = vand.u32 %v927, 4294901760
        %929 = vmatpush2.msra.mxu0 %v928
        %930 = vmatprep.subr.mxu0 0.0
        %v931 = vand.u32 %v201, 4294901760
        %v932 = vsub.f32 %v201, %v931
        %v933 = vand.u32 %v932, 4294901760
        %934 = vmatpush2.msra.mxu0 %v933
        %935 = vmatprep.subr.mxu0 0.0
        %v936 = vand.u32 %v200, 4294901760
        %v937 = vsub.f32 %v200, %v936
        %v938 = vand.u32 %v937, 4294901760
        %939 = vmatpush2.msra.mxu0 %v938
        %940 = vmatprep.subr.mxu0 0.0
        %v941 = vand.u32 %v199, 4294901760
        %v942 = vsub.f32 %v199, %v941
        %v943 = vand.u32 %v942, 4294901760
        %944 = vmatpush2.msra.mxu0 %v943
        %945 = vmatprep.subr.mxu0 0.0
        %v946 = vand.u32 %v198, 4294901760
        %v947 = vsub.f32 %v198, %v946
        %v948 = vand.u32 %v947, 4294901760
        %949 = vmatpush2.msra.mxu0 %v948
        %950 = vmatprep.subr.mxu0 0.0
        %v951 = vand.u32 %v197, 4294901760
        %v952 = vsub.f32 %v197, %v951
        %v953 = vand.u32 %v952, 4294901760
        %954 = vmatpush2.msra.mxu0 %v953
        %955 = vmatprep.subr.mxu0 0.0
        %v956 = vand.u32 %v196, 4294901760
        %v957 = vsub.f32 %v196, %v956
        %v958 = vand.u32 %v957, 4294901760
        %959 = vmatpush2.msra.mxu0 %v958
        %960 = vmatprep.subr.mxu0 0.0
        %v961 = vand.u32 %v195, 4294901760
        %v962 = vsub.f32 %v195, %v961
        %v963 = vand.u32 %v962, 4294901760
        %964 = vmatpush2.msra.mxu0 %v963
        %965 = vmatprep.subr.mxu0 0.0
        %v966 = vand.u32 %v194, 4294901760
        %v967 = vsub.f32 %v194, %v966
        %v968 = vand.u32 %v967, 4294901760
        %969 = vmatpush2.msra.mxu0 %v968
        %970 = vmatprep.subr.mxu0 0.0
        %v971 = vand.u32 %v193, 4294901760
        %v972 = vsub.f32 %v193, %v971
        %v973 = vand.u32 %v972, 4294901760
        %974 = vmatpush2.msra.mxu0 %v973
        %975 = vmatprep.subr.mxu0 0.0
        %v976 = vand.u32 %v192, 4294901760
        %v977 = vsub.f32 %v192, %v976
        %v978 = vand.u32 %v977, 4294901760
        %979 = vmatpush2.msra.mxu0 %v978
        %980 = vmatprep.subr.mxu0 0.0
        %v981 = vand.u32 %v191, 4294901760
        %v982 = vsub.f32 %v191, %v981
        %v983 = vand.u32 %v982, 4294901760
        %984 = vmatpush2.msra.mxu0 %v983
        %985 = vmatprep.subr.mxu0 0.0
        %v986 = vand.u32 %v190, 4294901760
        %v987 = vsub.f32 %v190, %v986
        %v988 = vand.u32 %v987, 4294901760
        %989 = vmatpush2.msra.mxu0 %v988
        %v990 = vand.u32 %v171, 4294901760
        %991 = vmatprep.mubr.f32.mxu0 %v990
        %v992 = vand.u32 %v170, 4294901760
        %993 = vmatmul.mubr.f32.gmra.mxu0 %v992
        %v994 = vpop.f32.mrf.mxu0
        %v995 = vadd.f32 %v827, %v994
        %v996 = vpop.f32.mrf.mxu0
        %997 = vdwg.mxu0
        %998 = vmatprep.subr.mxu0 0.0
        %v999 = vand.u32 %v189, 4294901760
        %1000 = vmatpush1.msra.mxu0 %v999
        %1001 = vmatprep.subr.mxu0 0.0
        %v1002 = vand.u32 %v188, 4294901760
        %1003 = vmatpush1.msra.mxu0 %v1002
        %1004 = vmatprep.subr.mxu0 0.0
        %v1005 = vand.u32 %v187, 4294901760
        %1006 = vmatpush1.msra.mxu0 %v1005
        %1007 = vmatprep.subr.mxu0 0.0
        %v1008 = vand.u32 %v186, 4294901760
        %1009 = vmatpush1.msra.mxu0 %v1008
        %1010 = vmatprep.subr.mxu0 0.0
        %v1011 = vand.u32 %v185, 4294901760
        %1012 = vmatpush1.msra.mxu0 %v1011
        %1013 = vmatprep.subr.mxu0 0.0
        %v1014 = vand.u32 %v184, 4294901760
        %1015 = vmatpush1.msra.mxu0 %v1014
        %1016 = vmatprep.subr.mxu0 0.0
        %v1017 = vand.u32 %v183, 4294901760
        %1018 = vmatpush1.msra.mxu0 %v1017
        %1019 = vmatprep.subr.mxu0 0.0
        %v1020 = vand.u32 %v182, 4294901760
        %1021 = vmatpush1.msra.mxu0 %v1020
        %1022 = vmatprep.subr.mxu0 0.0
        %v1023 = vand.u32 %v181, 4294901760
        %1024 = vmatpush1.msra.mxu0 %v1023
        %1025 = vmatprep.subr.mxu0 0.0
        %v1026 = vand.u32 %v180, 4294901760
        %1027 = vmatpush1.msra.mxu0 %v1026
        %1028 = vmatprep.subr.mxu0 0.0
        %v1029 = vand.u32 %v179, 4294901760
        %1030 = vmatpush1.msra.mxu0 %v1029
        %1031 = vmatprep.subr.mxu0 0.0
        %v1032 = vand.u32 %v178, 4294901760
        %1033 = vmatpush1.msra.mxu0 %v1032
        %1034 = vmatprep.subr.mxu0 0.0
        %v1035 = vand.u32 %v177, 4294901760
        %1036 = vmatpush1.msra.mxu0 %v1035
        %1037 = vmatprep.subr.mxu0 0.0
        %v1038 = vand.u32 %v176, 4294901760
        %1039 = vmatpush1.msra.mxu0 %v1038
        %1040 = vmatprep.subr.mxu0 0.0
        %v1041 = vand.u32 %v175, 4294901760
        %1042 = vmatpush1.msra.mxu0 %v1041
        %1043 = vmatprep.subr.mxu0 0.0
        %v1044 = vand.u32 %v174, 4294901760
        %1045 = vmatpush1.msra.mxu0 %v1044
        %1046 = vmatprep.subr.mxu0 0.0
        %v1047 = vand.u32 %v205, 4294901760
        %1048 = vmatpush2.msra.mxu0 %v1047
        %1049 = vmatprep.subr.mxu0 0.0
        %v1050 = vand.u32 %v204, 4294901760
        %1051 = vmatpush2.msra.mxu0 %v1050
        %1052 = vmatprep.subr.mxu0 0.0
        %v1053 = vand.u32 %v203, 4294901760
        %1054 = vmatpush2.msra.mxu0 %v1053
        %1055 = vmatprep.subr.mxu0 0.0
        %v1056 = vand.u32 %v202, 4294901760
        %1057 = vmatpush2.msra.mxu0 %v1056
        %1058 = vmatprep.subr.mxu0 0.0
        %v1059 = vand.u32 %v201, 4294901760
        %1060 = vmatpush2.msra.mxu0 %v1059
        %1061 = vmatprep.subr.mxu0 0.0
        %v1062 = vand.u32 %v200, 4294901760
        %1063 = vmatpush2.msra.mxu0 %v1062
        %1064 = vmatprep.subr.mxu0 0.0
        %v1065 = vand.u32 %v199, 4294901760
        %1066 = vmatpush2.msra.mxu0 %v1065
        %1067 = vmatprep.subr.mxu0 0.0
        %v1068 = vand.u32 %v198, 4294901760
        %1069 = vmatpush2.msra.mxu0 %v1068
        %1070 = vmatprep.subr.mxu0 0.0
        %v1071 = vand.u32 %v197, 4294901760
        %1072 = vmatpush2.msra.mxu0 %v1071
        %1073 = vmatprep.subr.mxu0 0.0
        %v1074 = vand.u32 %v196, 4294901760
        %1075 = vmatpush2.msra.mxu0 %v1074
        %1076 = vmatprep.subr.mxu0 0.0
        %v1077 = vand.u32 %v195, 4294901760
        %1078 = vmatpush2.msra.mxu0 %v1077
        %1079 = vmatprep.subr.mxu0 0.0
        %v1080 = vand.u32 %v194, 4294901760
        %1081 = vmatpush2.msra.mxu0 %v1080
        %1082 = vmatprep.subr.mxu0 0.0
        %v1083 = vand.u32 %v193, 4294901760
        %1084 = vmatpush2.msra.mxu0 %v1083
        %1085 = vmatprep.subr.mxu0 0.0
        %v1086 = vand.u32 %v192, 4294901760
        %1087 = vmatpush2.msra.mxu0 %v1086
        %1088 = vmatprep.subr.mxu0 0.0
        %v1089 = vand.u32 %v191, 4294901760
        %1090 = vmatpush2.msra.mxu0 %v1089
        %1091 = vmatprep.subr.mxu0 0.0
        %v1092 = vand.u32 %v190, 4294901760
        %1093 = vmatpush2.msra.mxu0 %v1092
        %v1094 = vand.u32 %v171, 4294901760
        %1095 = vmatprep.mubr.f32.mxu0 %v1094
        %v1096 = vand.u32 %v170, 4294901760
        %1097 = vmatmul.mubr.f32.gmra.mxu0 %v1096
        %v1098 = vpop.f32.mrf.mxu0
        %v1099 = vadd.f32 %v995, %v1098
        %v1100 = vpop.f32.mrf.mxu0
        %1101 = vdwg.mxu0
        %1102 = vmatprep.subr.mxu0 0.0
        %v1103 = vand.u32 %v221, 4294901760
        %1104 = vmatpush1.msra.mxu0 %v1103
        %1105 = vmatprep.subr.mxu0 0.0
        %v1106 = vand.u32 %v220, 4294901760
        %1107 = vmatpush1.msra.mxu0 %v1106
        %1108 = vmatprep.subr.mxu0 0.0
        %v1109 = vand.u32 %v219, 4294901760
        %1110 = vmatpush1.msra.mxu0 %v1109
        %1111 = vmatprep.subr.mxu0 0.0
        %v1112 = vand.u32 %v218, 4294901760
        %1113 = vmatpush1.msra.mxu0 %v1112
        %1114 = vmatprep.subr.mxu0 0.0
        %v1115 = vand.u32 %v217, 4294901760
        %1116 = vmatpush1.msra.mxu0 %v1115
        %1117 = vmatprep.subr.mxu0 0.0
        %v1118 = vand.u32 %v216, 4294901760
        %1119 = vmatpush1.msra.mxu0 %v1118
        %1120 = vmatprep.subr.mxu0 0.0
        %v1121 = vand.u32 %v215, 4294901760
        %1122 = vmatpush1.msra.mxu0 %v1121
        %1123 = vmatprep.subr.mxu0 0.0
        %v1124 = vand.u32 %v214, 4294901760
        %1125 = vmatpush1.msra.mxu0 %v1124
        %1126 = vmatprep.subr.mxu0 0.0
        %v1127 = vand.u32 %v213, 4294901760
        %1128 = vmatpush1.msra.mxu0 %v1127
        %1129 = vmatprep.subr.mxu0 0.0
        %v1130 = vand.u32 %v212, 4294901760
        %1131 = vmatpush1.msra.mxu0 %v1130
        %1132 = vmatprep.subr.mxu0 0.0
        %v1133 = vand.u32 %v211, 4294901760
        %1134 = vmatpush1.msra.mxu0 %v1133
        %1135 = vmatprep.subr.mxu0 0.0
        %v1136 = vand.u32 %v210, 4294901760
        %1137 = vmatpush1.msra.mxu0 %v1136
        %1138 = vmatprep.subr.mxu0 0.0
        %v1139 = vand.u32 %v209, 4294901760
        %1140 = vmatpush1.msra.mxu0 %v1139
        %1141 = vmatprep.subr.mxu0 0.0
        %v1142 = vand.u32 %v208, 4294901760
        %1143 = vmatpush1.msra.mxu0 %v1142
        %1144 = vmatprep.subr.mxu0 0.0
        %v1145 = vand.u32 %v207, 4294901760
        %1146 = vmatpush1.msra.mxu0 %v1145
        %1147 = vmatprep.subr.mxu0 0.0
        %v1148 = vand.u32 %v206, 4294901760
        %1149 = vmatpush1.msra.mxu0 %v1148
        %1150 = vmatprep.subr.mxu0 0.0
        %v1151 = vand.u32 %v237, 4294901760
        %1152 = vmatpush2.msra.mxu0 %v1151
        %1153 = vmatprep.subr.mxu0 0.0
        %v1154 = vand.u32 %v236, 4294901760
        %1155 = vmatpush2.msra.mxu0 %v1154
        %1156 = vmatprep.subr.mxu0 0.0
        %v1157 = vand.u32 %v235, 4294901760
        %1158 = vmatpush2.msra.mxu0 %v1157
        %1159 = vmatprep.subr.mxu0 0.0
        %v1160 = vand.u32 %v234, 4294901760
        %1161 = vmatpush2.msra.mxu0 %v1160
        %1162 = vmatprep.subr.mxu0 0.0
        %v1163 = vand.u32 %v233, 4294901760
        %1164 = vmatpush2.msra.mxu0 %v1163
        %1165 = vmatprep.subr.mxu0 0.0
        %v1166 = vand.u32 %v232, 4294901760
        %1167 = vmatpush2.msra.mxu0 %v1166
        %1168 = vmatprep.subr.mxu0 0.0
        %v1169 = vand.u32 %v231, 4294901760
        %1170 = vmatpush2.msra.mxu0 %v1169
        %1171 = vmatprep.subr.mxu0 0.0
        %v1172 = vand.u32 %v230, 4294901760
        %1173 = vmatpush2.msra.mxu0 %v1172
        %1174 = vmatprep.subr.mxu0 0.0
        %v1175 = vand.u32 %v229, 4294901760
        %1176 = vmatpush2.msra.mxu0 %v1175
        %1177 = vmatprep.subr.mxu0 0.0
        %v1178 = vand.u32 %v228, 4294901760
        %1179 = vmatpush2.msra.mxu0 %v1178
        %1180 = vmatprep.subr.mxu0 0.0
        %v1181 = vand.u32 %v227, 4294901760
        %1182 = vmatpush2.msra.mxu0 %v1181
        %1183 = vmatprep.subr.mxu0 0.0
        %v1184 = vand.u32 %v226, 4294901760
        %1185 = vmatpush2.msra.mxu0 %v1184
        %1186 = vmatprep.subr.mxu0 0.0
        %v1187 = vand.u32 %v225, 4294901760
        %1188 = vmatpush2.msra.mxu0 %v1187
        %1189 = vmatprep.subr.mxu0 0.0
        %v1190 = vand.u32 %v224, 4294901760
        %1191 = vmatpush2.msra.mxu0 %v1190
        %1192 = vmatprep.subr.mxu0 0.0
        %v1193 = vand.u32 %v223, 4294901760
        %1194 = vmatpush2.msra.mxu0 %v1193
        %1195 = vmatprep.subr.mxu0 0.0
        %v1196 = vand.u32 %v222, 4294901760
        %1197 = vmatpush2.msra.mxu0 %v1196
        %v1198 = vand.u32 %v173, 4294901760
        %v1199 = vsub.f32 %v173, %v1198
        %v1200 = vand.u32 %v1199, 4294901760
        %v1201 = vsub.f32 %v1199, %v1200
        %v1202 = vand.u32 %v1201, 4294901760
        %1203 = vmatprep.mubr.f32.mxu0 %v1202
        %v1204 = vand.u32 %v172, 4294901760
        %v1205 = vsub.f32 %v172, %v1204
        %v1206 = vand.u32 %v1205, 4294901760
        %v1207 = vsub.f32 %v1205, %v1206
        %v1208 = vand.u32 %v1207, 4294901760
        %1209 = vmatmul.mubr.f32.gmra.mxu0 %v1208
        %v1210 = vpop.f32.mrf.mxu0
        %v1211 = vadd.f32 %v1099, %v1210
        %v1212 = vpop.f32.mrf.mxu0
        %1213 = vdwg.mxu0
        %1214 = vmatprep.subr.mxu0 0.0
        %v1215 = vand.u32 %v221, 4294901760
        %v1216 = vsub.f32 %v221, %v1215
        %v1217 = vand.u32 %v1216, 4294901760
        %v1218 = vsub.f32 %v1216, %v1217
        %v1219 = vand.u32 %v1218, 4294901760
        %1220 = vmatpush1.msra.mxu0 %v1219
        %1221 = vmatprep.subr.mxu0 0.0
        %v1222 = vand.u32 %v220, 4294901760
        %v1223 = vsub.f32 %v220, %v1222
        %v1224 = vand.u32 %v1223, 4294901760
        %v1225 = vsub.f32 %v1223, %v1224
        %v1226 = vand.u32 %v1225, 4294901760
        %1227 = vmatpush1.msra.mxu0 %v1226
        %1228 = vmatprep.subr.mxu0 0.0
        %v1229 = vand.u32 %v219, 4294901760
        %v1230 = vsub.f32 %v219, %v1229
        %v1231 = vand.u32 %v1230, 4294901760
        %v1232 = vsub.f32 %v1230, %v1231
        %v1233 = vand.u32 %v1232, 4294901760
        %1234 = vmatpush1.msra.mxu0 %v1233
        %1235 = vmatprep.subr.mxu0 0.0
        %v1236 = vand.u32 %v218, 4294901760
        %v1237 = vsub.f32 %v218, %v1236
        %v1238 = vand.u32 %v1237, 4294901760
        %v1239 = vsub.f32 %v1237, %v1238
        %v1240 = vand.u32 %v1239, 4294901760
        %1241 = vmatpush1.msra.mxu0 %v1240
        %1242 = vmatprep.subr.mxu0 0.0
        %v1243 = vand.u32 %v217, 4294901760
        %v1244 = vsub.f32 %v217, %v1243
        %v1245 = vand.u32 %v1244, 4294901760
        %v1246 = vsub.f32 %v1244, %v1245
        %v1247 = vand.u32 %v1246, 4294901760
        %1248 = vmatpush1.msra.mxu0 %v1247
        %1249 = vmatprep.subr.mxu0 0.0
        %v1250 = vand.u32 %v216, 4294901760
        %v1251 = vsub.f32 %v216, %v1250
        %v1252 = vand.u32 %v1251, 4294901760
        %v1253 = vsub.f32 %v1251, %v1252
        %v1254 = vand.u32 %v1253, 4294901760
        %1255 = vmatpush1.msra.mxu0 %v1254
        %1256 = vmatprep.subr.mxu0 0.0
        %v1257 = vand.u32 %v215, 4294901760
        %v1258 = vsub.f32 %v215, %v1257
        %v1259 = vand.u32 %v1258, 4294901760
        %v1260 = vsub.f32 %v1258, %v1259
        %v1261 = vand.u32 %v1260, 4294901760
        %1262 = vmatpush1.msra.mxu0 %v1261
        %1263 = vmatprep.subr.mxu0 0.0
        %v1264 = vand.u32 %v214, 4294901760
        %v1265 = vsub.f32 %v214, %v1264
        %v1266 = vand.u32 %v1265, 4294901760
        %v1267 = vsub.f32 %v1265, %v1266
        %v1268 = vand.u32 %v1267, 4294901760
        %1269 = vmatpush1.msra.mxu0 %v1268
        %1270 = vmatprep.subr.mxu0 0.0
        %v1271 = vand.u32 %v213, 4294901760
        %v1272 = vsub.f32 %v213, %v1271
        %v1273 = vand.u32 %v1272, 4294901760
        %v1274 = vsub.f32 %v1272, %v1273
        %v1275 = vand.u32 %v1274, 4294901760
        %1276 = vmatpush1.msra.mxu0 %v1275
        %1277 = vmatprep.subr.mxu0 0.0
        %v1278 = vand.u32 %v212, 4294901760
        %v1279 = vsub.f32 %v212, %v1278
        %v1280 = vand.u32 %v1279, 4294901760
        %v1281 = vsub.f32 %v1279, %v1280
        %v1282 = vand.u32 %v1281, 4294901760
        %1283 = vmatpush1.msra.mxu0 %v1282
        %1284 = vmatprep.subr.mxu0 0.0
        %v1285 = vand.u32 %v211, 4294901760
        %v1286 = vsub.f32 %v211, %v1285
        %v1287 = vand.u32 %v1286, 4294901760
        %v1288 = vsub.f32 %v1286, %v1287
        %v1289 = vand.u32 %v1288, 4294901760
        %1290 = vmatpush1.msra.mxu0 %v1289
        %1291 = vmatprep.subr.mxu0 0.0
        %v1292 = vand.u32 %v210, 4294901760
        %v1293 = vsub.f32 %v210, %v1292
        %v1294 = vand.u32 %v1293, 4294901760
        %v1295 = vsub.f32 %v1293, %v1294
        %v1296 = vand.u32 %v1295, 4294901760
        %1297 = vmatpush1.msra.mxu0 %v1296
        %1298 = vmatprep.subr.mxu0 0.0
        %v1299 = vand.u32 %v209, 4294901760
        %v1300 = vsub.f32 %v209, %v1299
        %v1301 = vand.u32 %v1300, 4294901760
        %v1302 = vsub.f32 %v1300, %v1301
        %v1303 = vand.u32 %v1302, 4294901760
        %1304 = vmatpush1.msra.mxu0 %v1303
        %1305 = vmatprep.subr.mxu0 0.0
        %v1306 = vand.u32 %v208, 4294901760
        %v1307 = vsub.f32 %v208, %v1306
        %v1308 = vand.u32 %v1307, 4294901760
        %v1309 = vsub.f32 %v1307, %v1308
        %v1310 = vand.u32 %v1309, 4294901760
        %1311 = vmatpush1.msra.mxu0 %v1310
        %1312 = vmatprep.subr.mxu0 0.0
        %v1313 = vand.u32 %v207, 4294901760
        %v1314 = vsub.f32 %v207, %v1313
        %v1315 = vand.u32 %v1314, 4294901760
        %v1316 = vsub.f32 %v1314, %v1315
        %v1317 = vand.u32 %v1316, 4294901760
        %1318 = vmatpush1.msra.mxu0 %v1317
        %1319 = vmatprep.subr.mxu0 0.0
        %v1320 = vand.u32 %v206, 4294901760
        %v1321 = vsub.f32 %v206, %v1320
        %v1322 = vand.u32 %v1321, 4294901760
        %v1323 = vsub.f32 %v1321, %v1322
        %v1324 = vand.u32 %v1323, 4294901760
        %1325 = vmatpush1.msra.mxu0 %v1324
        %1326 = vmatprep.subr.mxu0 0.0
        %v1327 = vand.u32 %v237, 4294901760
        %v1328 = vsub.f32 %v237, %v1327
        %v1329 = vand.u32 %v1328, 4294901760
        %v1330 = vsub.f32 %v1328, %v1329
        %v1331 = vand.u32 %v1330, 4294901760
        %1332 = vmatpush2.msra.mxu0 %v1331
        %1333 = vmatprep.subr.mxu0 0.0
        %v1334 = vand.u32 %v236, 4294901760
        %v1335 = vsub.f32 %v236, %v1334
        %v1336 = vand.u32 %v1335, 4294901760
        %v1337 = vsub.f32 %v1335, %v1336
        %v1338 = vand.u32 %v1337, 4294901760
        %1339 = vmatpush2.msra.mxu0 %v1338
        %1340 = vmatprep.subr.mxu0 0.0
        %v1341 = vand.u32 %v235, 4294901760
        %v1342 = vsub.f32 %v235, %v1341
        %v1343 = vand.u32 %v1342, 4294901760
        %v1344 = vsub.f32 %v1342, %v1343
        %v1345 = vand.u32 %v1344, 4294901760
        %1346 = vmatpush2.msra.mxu0 %v1345
        %1347 = vmatprep.subr.mxu0 0.0
        %v1348 = vand.u32 %v234, 4294901760
        %v1349 = vsub.f32 %v234, %v1348
        %v1350 = vand.u32 %v1349, 4294901760
        %v1351 = vsub.f32 %v1349, %v1350
        %v1352 = vand.u32 %v1351, 4294901760
        %1353 = vmatpush2.msra.mxu0 %v1352
        %1354 = vmatprep.subr.mxu0 0.0
        %v1355 = vand.u32 %v233, 4294901760
        %v1356 = vsub.f32 %v233, %v1355
        %v1357 = vand.u32 %v1356, 4294901760
        %v1358 = vsub.f32 %v1356, %v1357
        %v1359 = vand.u32 %v1358, 4294901760
        %1360 = vmatpush2.msra.mxu0 %v1359
        %1361 = vmatprep.subr.mxu0 0.0
        %v1362 = vand.u32 %v232, 4294901760
        %v1363 = vsub.f32 %v232, %v1362
        %v1364 = vand.u32 %v1363, 4294901760
        %v1365 = vsub.f32 %v1363, %v1364
        %v1366 = vand.u32 %v1365, 4294901760
        %1367 = vmatpush2.msra.mxu0 %v1366
        %1368 = vmatprep.subr.mxu0 0.0
        %v1369 = vand.u32 %v231, 4294901760
        %v1370 = vsub.f32 %v231, %v1369
        %v1371 = vand.u32 %v1370, 4294901760
        %v1372 = vsub.f32 %v1370, %v1371
        %v1373 = vand.u32 %v1372, 4294901760
        %1374 = vmatpush2.msra.mxu0 %v1373
        %1375 = vmatprep.subr.mxu0 0.0
        %v1376 = vand.u32 %v230, 4294901760
        %v1377 = vsub.f32 %v230, %v1376
        %v1378 = vand.u32 %v1377, 4294901760
        %v1379 = vsub.f32 %v1377, %v1378
        %v1380 = vand.u32 %v1379, 4294901760
        %1381 = vmatpush2.msra.mxu0 %v1380
        %1382 = vmatprep.subr.mxu0 0.0
        %v1383 = vand.u32 %v229, 4294901760
        %v1384 = vsub.f32 %v229, %v1383
        %v1385 = vand.u32 %v1384, 4294901760
        %v1386 = vsub.f32 %v1384, %v1385
        %v1387 = vand.u32 %v1386, 4294901760
        %1388 = vmatpush2.msra.mxu0 %v1387
        %1389 = vmatprep.subr.mxu0 0.0
        %v1390 = vand.u32 %v228, 4294901760
        %v1391 = vsub.f32 %v228, %v1390
        %v1392 = vand.u32 %v1391, 4294901760
        %v1393 = vsub.f32 %v1391, %v1392
        %v1394 = vand.u32 %v1393, 4294901760
        %1395 = vmatpush2.msra.mxu0 %v1394
        %1396 = vmatprep.subr.mxu0 0.0
        %v1397 = vand.u32 %v227, 4294901760
        %v1398 = vsub.f32 %v227, %v1397
        %v1399 = vand.u32 %v1398, 4294901760
        %v1400 = vsub.f32 %v1398, %v1399
        %v1401 = vand.u32 %v1400, 4294901760
        %1402 = vmatpush2.msra.mxu0 %v1401
        %1403 = vmatprep.subr.mxu0 0.0
        %v1404 = vand.u32 %v226, 4294901760
        %v1405 = vsub.f32 %v226, %v1404
        %v1406 = vand.u32 %v1405, 4294901760
        %v1407 = vsub.f32 %v1405, %v1406
        %v1408 = vand.u32 %v1407, 4294901760
        %1409 = vmatpush2.msra.mxu0 %v1408
        %1410 = vmatprep.subr.mxu0 0.0
        %v1411 = vand.u32 %v225, 4294901760
        %v1412 = vsub.f32 %v225, %v1411
        %v1413 = vand.u32 %v1412, 4294901760
        %v1414 = vsub.f32 %v1412, %v1413
        %v1415 = vand.u32 %v1414, 4294901760
        %1416 = vmatpush2.msra.mxu0 %v1415
        %1417 = vmatprep.subr.mxu0 0.0
        %v1418 = vand.u32 %v224, 4294901760
        %v1419 = vsub.f32 %v224, %v1418
        %v1420 = vand.u32 %v1419, 4294901760
        %v1421 = vsub.f32 %v1419, %v1420
        %v1422 = vand.u32 %v1421, 4294901760
        %1423 = vmatpush2.msra.mxu0 %v1422
        %1424 = vmatprep.subr.mxu0 0.0
        %v1425 = vand.u32 %v223, 4294901760
        %v1426 = vsub.f32 %v223, %v1425
        %v1427 = vand.u32 %v1426, 4294901760
        %v1428 = vsub.f32 %v1426, %v1427
        %v1429 = vand.u32 %v1428, 4294901760
        %1430 = vmatpush2.msra.mxu0 %v1429
        %1431 = vmatprep.subr.mxu0 0.0
        %v1432 = vand.u32 %v222, 4294901760
        %v1433 = vsub.f32 %v222, %v1432
        %v1434 = vand.u32 %v1433, 4294901760
        %v1435 = vsub.f32 %v1433, %v1434
        %v1436 = vand.u32 %v1435, 4294901760
        %1437 = vmatpush2.msra.mxu0 %v1436
        %v1438 = vand.u32 %v173, 4294901760
        %1439 = vmatprep.mubr.f32.mxu0 %v1438
        %v1440 = vand.u32 %v172, 4294901760
        %1441 = vmatmul.mubr.f32.gmra.mxu0 %v1440
        %v1442 = vpop.f32.mrf.mxu0
        %v1443 = vadd.f32 %v1211, %v1442
        %v1444 = vpop.f32.mrf.mxu0
        %1445 = vdwg.mxu0
        %1446 = vmatprep.subr.mxu0 0.0
        %v1447 = vand.u32 %v221, 4294901760
        %v1448 = vsub.f32 %v221, %v1447
        %1449 = vmatpush1.msra.mxu0 %v1448
        %1450 = vmatprep.subr.mxu0 0.0
        %v1451 = vand.u32 %v220, 4294901760
        %v1452 = vsub.f32 %v220, %v1451
        %1453 = vmatpush1.msra.mxu0 %v1452
        %1454 = vmatprep.subr.mxu0 0.0
        %v1455 = vand.u32 %v219, 4294901760
        %v1456 = vsub.f32 %v219, %v1455
        %1457 = vmatpush1.msra.mxu0 %v1456
        %1458 = vmatprep.subr.mxu0 0.0
        %v1459 = vand.u32 %v218, 4294901760
        %v1460 = vsub.f32 %v218, %v1459
        %1461 = vmatpush1.msra.mxu0 %v1460
        %1462 = vmatprep.subr.mxu0 0.0
        %v1463 = vand.u32 %v217, 4294901760
        %v1464 = vsub.f32 %v217, %v1463
        %1465 = vmatpush1.msra.mxu0 %v1464
        %1466 = vmatprep.subr.mxu0 0.0
        %v1467 = vand.u32 %v216, 4294901760
        %v1468 = vsub.f32 %v216, %v1467
        %1469 = vmatpush1.msra.mxu0 %v1468
        %1470 = vmatprep.subr.mxu0 0.0
        %v1471 = vand.u32 %v215, 4294901760
        %v1472 = vsub.f32 %v215, %v1471
        %1473 = vmatpush1.msra.mxu0 %v1472
        %1474 = vmatprep.subr.mxu0 0.0
        %v1475 = vand.u32 %v214, 4294901760
        %v1476 = vsub.f32 %v214, %v1475
        %1477 = vmatpush1.msra.mxu0 %v1476
        %1478 = vmatprep.subr.mxu0 0.0
        %v1479 = vand.u32 %v213, 4294901760
        %v1480 = vsub.f32 %v213, %v1479
        %1481 = vmatpush1.msra.mxu0 %v1480
        %1482 = vmatprep.subr.mxu0 0.0
        %v1483 = vand.u32 %v212, 4294901760
        %v1484 = vsub.f32 %v212, %v1483
        %1485 = vmatpush1.msra.mxu0 %v1484
        %1486 = vmatprep.subr.mxu0 0.0
        %v1487 = vand.u32 %v211, 4294901760
        %v1488 = vsub.f32 %v211, %v1487
        %1489 = vmatpush1.msra.mxu0 %v1488
        %1490 = vmatprep.subr.mxu0 0.0
        %v1491 = vand.u32 %v210, 4294901760
        %v1492 = vsub.f32 %v210, %v1491
        %1493 = vmatpush1.msra.mxu0 %v1492
        %1494 = vmatprep.subr.mxu0 0.0
        %v1495 = vand.u32 %v209, 4294901760
        %v1496 = vsub.f32 %v209, %v1495
        %1497 = vmatpush1.msra.mxu0 %v1496
        %1498 = vmatprep.subr.mxu0 0.0
        %v1499 = vand.u32 %v208, 4294901760
        %v1500 = vsub.f32 %v208, %v1499
        %1501 = vmatpush1.msra.mxu0 %v1500
        %1502 = vmatprep.subr.mxu0 0.0
        %v1503 = vand.u32 %v207, 4294901760
        %v1504 = vsub.f32 %v207, %v1503
        %1505 = vmatpush1.msra.mxu0 %v1504
        %1506 = vmatprep.subr.mxu0 0.0
        %v1507 = vand.u32 %v206, 4294901760
        %v1508 = vsub.f32 %v206, %v1507
        %1509 = vmatpush1.msra.mxu0 %v1508
        %1510 = vmatprep.subr.mxu0 0.0
        %v1511 = vand.u32 %v237, 4294901760
        %v1512 = vsub.f32 %v237, %v1511
        %1513 = vmatpush2.msra.mxu0 %v1512
        %1514 = vmatprep.subr.mxu0 0.0
        %v1515 = vand.u32 %v236, 4294901760
        %v1516 = vsub.f32 %v236, %v1515
        %1517 = vmatpush2.msra.mxu0 %v1516
        %1518 = vmatprep.subr.mxu0 0.0
        %v1519 = vand.u32 %v235, 4294901760
        %v1520 = vsub.f32 %v235, %v1519
        %1521 = vmatpush2.msra.mxu0 %v1520
        %1522 = vmatprep.subr.mxu0 0.0
        %v1523 = vand.u32 %v234, 4294901760
        %v1524 = vsub.f32 %v234, %v1523
        %1525 = vmatpush2.msra.mxu0 %v1524
        %1526 = vmatprep.subr.mxu0 0.0
        %v1527 = vand.u32 %v233, 4294901760
        %v1528 = vsub.f32 %v233, %v1527
        %1529 = vmatpush2.msra.mxu0 %v1528
        %1530 = vmatprep.subr.mxu0 0.0
        %v1531 = vand.u32 %v232, 4294901760
        %v1532 = vsub.f32 %v232, %v1531
        %1533 = vmatpush2.msra.mxu0 %v1532
        %1534 = vmatprep.subr.mxu0 0.0
        %v1535 = vand.u32 %v231, 4294901760
        %v1536 = vsub.f32 %v231, %v1535
        %1537 = vmatpush2.msra.mxu0 %v1536
        %1538 = vmatprep.subr.mxu0 0.0
        %v1539 = vand.u32 %v230, 4294901760
        %v1540 = vsub.f32 %v230, %v1539
        %1541 = vmatpush2.msra.mxu0 %v1540
        %1542 = vmatprep.subr.mxu0 0.0
        %v1543 = vand.u32 %v229, 4294901760
        %v1544 = vsub.f32 %v229, %v1543
        %1545 = vmatpush2.msra.mxu0 %v1544
        %1546 = vmatprep.subr.mxu0 0.0
        %v1547 = vand.u32 %v228, 4294901760
        %v1548 = vsub.f32 %v228, %v1547
        %1549 = vmatpush2.msra.mxu0 %v1548
        %1550 = vmatprep.subr.mxu0 0.0
        %v1551 = vand.u32 %v227, 4294901760
        %v1552 = vsub.f32 %v227, %v1551
        %1553 = vmatpush2.msra.mxu0 %v1552
        %1554 = vmatprep.subr.mxu0 0.0
        %v1555 = vand.u32 %v226, 4294901760
        %v1556 = vsub.f32 %v226, %v1555
        %1557 = vmatpush2.msra.mxu0 %v1556
        %1558 = vmatprep.subr.mxu0 0.0
        %v1559 = vand.u32 %v225, 4294901760
        %v1560 = vsub.f32 %v225, %v1559
        %1561 = vmatpush2.msra.mxu0 %v1560
        %1562 = vmatprep.subr.mxu0 0.0
        %v1563 = vand.u32 %v224, 4294901760
        %v1564 = vsub.f32 %v224, %v1563
        %1565 = vmatpush2.msra.mxu0 %v1564
        %1566 = vmatprep.subr.mxu0 0.0
        %v1567 = vand.u32 %v223, 4294901760
        %v1568 = vsub.f32 %v223, %v1567
        %1569 = vmatpush2.msra.mxu0 %v1568
        %1570 = vmatprep.subr.mxu0 0.0
        %v1571 = vand.u32 %v222, 4294901760
        %v1572 = vsub.f32 %v222, %v1571
        %1573 = vmatpush2.msra.mxu0 %v1572
        %v1574 = vand.u32 %v173, 4294901760
        %v1575 = vsub.f32 %v173, %v1574
        %1576 = vmatprep.mubr.f32.mxu0 %v1575
        %v1577 = vand.u32 %v172, 4294901760
        %v1578 = vsub.f32 %v172, %v1577
        %1579 = vmatmul.mubr.f32.gmra.mxu0 %v1578
        %v1580 = vpop.f32.mrf.mxu0
        %v1581 = vadd.f32 %v1443, %v1580
        %v1582 = vpop.f32.mrf.mxu0
        %1583 = vdwg.mxu0
        %1584 = vmatprep.subr.mxu0 0.0
        %v1585 = vand.u32 %v221, 4294901760
        %1586 = vmatpush1.msra.mxu0 %v1585
        %1587 = vmatprep.subr.mxu0 0.0
        %v1588 = vand.u32 %v220, 4294901760
        %1589 = vmatpush1.msra.mxu0 %v1588
        %1590 = vmatprep.subr.mxu0 0.0
        %v1591 = vand.u32 %v219, 4294901760
        %1592 = vmatpush1.msra.mxu0 %v1591
        %1593 = vmatprep.subr.mxu0 0.0
        %v1594 = vand.u32 %v218, 4294901760
        %1595 = vmatpush1.msra.mxu0 %v1594
        %1596 = vmatprep.subr.mxu0 0.0
        %v1597 = vand.u32 %v217, 4294901760
        %1598 = vmatpush1.msra.mxu0 %v1597
        %1599 = vmatprep.subr.mxu0 0.0
        %v1600 = vand.u32 %v216, 4294901760
        %1601 = vmatpush1.msra.mxu0 %v1600
        %1602 = vmatprep.subr.mxu0 0.0
        %v1603 = vand.u32 %v215, 4294901760
        %1604 = vmatpush1.msra.mxu0 %v1603
        %1605 = vmatprep.subr.mxu0 0.0
        %v1606 = vand.u32 %v214, 4294901760
        %1607 = vmatpush1.msra.mxu0 %v1606
        %1608 = vmatprep.subr.mxu0 0.0
        %v1609 = vand.u32 %v213, 4294901760
        %1610 = vmatpush1.msra.mxu0 %v1609
        %1611 = vmatprep.subr.mxu0 0.0
        %v1612 = vand.u32 %v212, 4294901760
        %1613 = vmatpush1.msra.mxu0 %v1612
        %1614 = vmatprep.subr.mxu0 0.0
        %v1615 = vand.u32 %v211, 4294901760
        %1616 = vmatpush1.msra.mxu0 %v1615
        %1617 = vmatprep.subr.mxu0 0.0
        %v1618 = vand.u32 %v210, 4294901760
        %1619 = vmatpush1.msra.mxu0 %v1618
        %1620 = vmatprep.subr.mxu0 0.0
        %v1621 = vand.u32 %v209, 4294901760
        %1622 = vmatpush1.msra.mxu0 %v1621
        %1623 = vmatprep.subr.mxu0 0.0
        %v1624 = vand.u32 %v208, 4294901760
        %1625 = vmatpush1.msra.mxu0 %v1624
        %1626 = vmatprep.subr.mxu0 0.0
        %v1627 = vand.u32 %v207, 4294901760
        %1628 = vmatpush1.msra.mxu0 %v1627
        %1629 = vmatprep.subr.mxu0 0.0
        %v1630 = vand.u32 %v206, 4294901760
        %1631 = vmatpush1.msra.mxu0 %v1630
        %1632 = vmatprep.subr.mxu0 0.0
        %v1633 = vand.u32 %v237, 4294901760
        %1634 = vmatpush2.msra.mxu0 %v1633
        %1635 = vmatprep.subr.mxu0 0.0
        %v1636 = vand.u32 %v236, 4294901760
        %1637 = vmatpush2.msra.mxu0 %v1636
        %1638 = vmatprep.subr.mxu0 0.0
        %v1639 = vand.u32 %v235, 4294901760
        %1640 = vmatpush2.msra.mxu0 %v1639
        %1641 = vmatprep.subr.mxu0 0.0
        %v1642 = vand.u32 %v234, 4294901760
        %1643 = vmatpush2.msra.mxu0 %v1642
        %1644 = vmatprep.subr.mxu0 0.0
        %v1645 = vand.u32 %v233, 4294901760
        %1646 = vmatpush2.msra.mxu0 %v1645
        %1647 = vmatprep.subr.mxu0 0.0
        %v1648 = vand.u32 %v232, 4294901760
        %1649 = vmatpush2.msra.mxu0 %v1648
        %1650 = vmatprep.subr.mxu0 0.0
        %v1651 = vand.u32 %v231, 4294901760
        %1652 = vmatpush2.msra.mxu0 %v1651
        %1653 = vmatprep.subr.mxu0 0.0
        %v1654 = vand.u32 %v230, 4294901760
        %1655 = vmatpush2.msra.mxu0 %v1654
        %1656 = vmatprep.subr.mxu0 0.0
        %v1657 = vand.u32 %v229, 4294901760
        %1658 = vmatpush2.msra.mxu0 %v1657
        %1659 = vmatprep.subr.mxu0 0.0
        %v1660 = vand.u32 %v228, 4294901760
        %1661 = vmatpush2.msra.mxu0 %v1660
        %1662 = vmatprep.subr.mxu0 0.0
        %v1663 = vand.u32 %v227, 4294901760
        %1664 = vmatpush2.msra.mxu0 %v1663
        %1665 = vmatprep.subr.mxu0 0.0
        %v1666 = vand.u32 %v226, 4294901760
        %1667 = vmatpush2.msra.mxu0 %v1666
        %1668 = vmatprep.subr.mxu0 0.0
        %v1669 = vand.u32 %v225, 4294901760
        %1670 = vmatpush2.msra.mxu0 %v1669
        %1671 = vmatprep.subr.mxu0 0.0
        %v1672 = vand.u32 %v224, 4294901760
        %1673 = vmatpush2.msra.mxu0 %v1672
        %1674 = vmatprep.subr.mxu0 0.0
        %v1675 = vand.u32 %v223, 4294901760
        %1676 = vmatpush2.msra.mxu0 %v1675
        %1677 = vmatprep.subr.mxu0 0.0
        %v1678 = vand.u32 %v222, 4294901760
        %1679 = vmatpush2.msra.mxu0 %v1678
        %v1680 = vand.u32 %v173, 4294901760
        %v1681 = vsub.f32 %v173, %v1680
        %v1682 = vand.u32 %v1681, 4294901760
        %1683 = vmatprep.mubr.f32.mxu0 %v1682
        %v1684 = vand.u32 %v172, 4294901760
        %v1685 = vsub.f32 %v172, %v1684
        %v1686 = vand.u32 %v1685, 4294901760
        %1687 = vmatmul.mubr.f32.gmra.mxu0 %v1686
        %v1688 = vpop.f32.mrf.mxu0
        %v1689 = vadd.f32 %v1581, %v1688
        %v1690 = vpop.f32.mrf.mxu0
        %1691 = vdwg.mxu0
        %1692 = vmatprep.subr.mxu0 0.0
        %v1693 = vand.u32 %v221, 4294901760
        %v1694 = vsub.f32 %v221, %v1693
        %v1695 = vand.u32 %v1694, 4294901760
        %1696 = vmatpush1.msra.mxu0 %v1695
        %1697 = vmatprep.subr.mxu0 0.0
        %v1698 = vand.u32 %v220, 4294901760
        %v1699 = vsub.f32 %v220, %v1698
        %v1700 = vand.u32 %v1699, 4294901760
        %1701 = vmatpush1.msra.mxu0 %v1700
        %1702 = vmatprep.subr.mxu0 0.0
        %v1703 = vand.u32 %v219, 4294901760
        %v1704 = vsub.f32 %v219, %v1703
        %v1705 = vand.u32 %v1704, 4294901760
        %1706 = vmatpush1.msra.mxu0 %v1705
        %1707 = vmatprep.subr.mxu0 0.0
        %v1708 = vand.u32 %v218, 4294901760
        %v1709 = vsub.f32 %v218, %v1708
        %v1710 = vand.u32 %v1709, 4294901760
        %1711 = vmatpush1.msra.mxu0 %v1710
        %1712 = vmatprep.subr.mxu0 0.0
        %v1713 = vand.u32 %v217, 4294901760
        %v1714 = vsub.f32 %v217, %v1713
        %v1715 = vand.u32 %v1714, 4294901760
        %1716 = vmatpush1.msra.mxu0 %v1715
        %1717 = vmatprep.subr.mxu0 0.0
        %v1718 = vand.u32 %v216, 4294901760
        %v1719 = vsub.f32 %v216, %v1718
        %v1720 = vand.u32 %v1719, 4294901760
        %1721 = vmatpush1.msra.mxu0 %v1720
        %1722 = vmatprep.subr.mxu0 0.0
        %v1723 = vand.u32 %v215, 4294901760
        %v1724 = vsub.f32 %v215, %v1723
        %v1725 = vand.u32 %v1724, 4294901760
        %1726 = vmatpush1.msra.mxu0 %v1725
        %1727 = vmatprep.subr.mxu0 0.0
        %v1728 = vand.u32 %v214, 4294901760
        %v1729 = vsub.f32 %v214, %v1728
        %v1730 = vand.u32 %v1729, 4294901760
        %1731 = vmatpush1.msra.mxu0 %v1730
        %1732 = vmatprep.subr.mxu0 0.0
        %v1733 = vand.u32 %v213, 4294901760
        %v1734 = vsub.f32 %v213, %v1733
        %v1735 = vand.u32 %v1734, 4294901760
        %1736 = vmatpush1.msra.mxu0 %v1735
        %1737 = vmatprep.subr.mxu0 0.0
        %v1738 = vand.u32 %v212, 4294901760
        %v1739 = vsub.f32 %v212, %v1738
        %v1740 = vand.u32 %v1739, 4294901760
        %1741 = vmatpush1.msra.mxu0 %v1740
        %1742 = vmatprep.subr.mxu0 0.0
        %v1743 = vand.u32 %v211, 4294901760
        %v1744 = vsub.f32 %v211, %v1743
        %v1745 = vand.u32 %v1744, 4294901760
        %1746 = vmatpush1.msra.mxu0 %v1745
        %1747 = vmatprep.subr.mxu0 0.0
        %v1748 = vand.u32 %v210, 4294901760
        %v1749 = vsub.f32 %v210, %v1748
        %v1750 = vand.u32 %v1749, 4294901760
        %1751 = vmatpush1.msra.mxu0 %v1750
        %1752 = vmatprep.subr.mxu0 0.0
        %v1753 = vand.u32 %v209, 4294901760
        %v1754 = vsub.f32 %v209, %v1753
        %v1755 = vand.u32 %v1754, 4294901760
        %1756 = vmatpush1.msra.mxu0 %v1755
        %1757 = vmatprep.subr.mxu0 0.0
        %v1758 = vand.u32 %v208, 4294901760
        %v1759 = vsub.f32 %v208, %v1758
        %v1760 = vand.u32 %v1759, 4294901760
        %1761 = vmatpush1.msra.mxu0 %v1760
        %1762 = vmatprep.subr.mxu0 0.0
        %v1763 = vand.u32 %v207, 4294901760
        %v1764 = vsub.f32 %v207, %v1763
        %v1765 = vand.u32 %v1764, 4294901760
        %1766 = vmatpush1.msra.mxu0 %v1765
        %1767 = vmatprep.subr.mxu0 0.0
        %v1768 = vand.u32 %v206, 4294901760
        %v1769 = vsub.f32 %v206, %v1768
        %v1770 = vand.u32 %v1769, 4294901760
        %1771 = vmatpush1.msra.mxu0 %v1770
        %1772 = vmatprep.subr.mxu0 0.0
        %v1773 = vand.u32 %v237, 4294901760
        %v1774 = vsub.f32 %v237, %v1773
        %v1775 = vand.u32 %v1774, 4294901760
        %1776 = vmatpush2.msra.mxu0 %v1775
        %1777 = vmatprep.subr.mxu0 0.0
        %v1778 = vand.u32 %v236, 4294901760
        %v1779 = vsub.f32 %v236, %v1778
        %v1780 = vand.u32 %v1779, 4294901760
        %1781 = vmatpush2.msra.mxu0 %v1780
        %1782 = vmatprep.subr.mxu0 0.0
        %v1783 = vand.u32 %v235, 4294901760
        %v1784 = vsub.f32 %v235, %v1783
        %v1785 = vand.u32 %v1784, 4294901760
        %1786 = vmatpush2.msra.mxu0 %v1785
        %1787 = vmatprep.subr.mxu0 0.0
        %v1788 = vand.u32 %v234, 4294901760
        %v1789 = vsub.f32 %v234, %v1788
        %v1790 = vand.u32 %v1789, 4294901760
        %1791 = vmatpush2.msra.mxu0 %v1790
        %1792 = vmatprep.subr.mxu0 0.0
        %v1793 = vand.u32 %v233, 4294901760
        %v1794 = vsub.f32 %v233, %v1793
        %v1795 = vand.u32 %v1794, 4294901760
        %1796 = vmatpush2.msra.mxu0 %v1795
        %1797 = vmatprep.subr.mxu0 0.0
        %v1798 = vand.u32 %v232, 4294901760
        %v1799 = vsub.f32 %v232, %v1798
        %v1800 = vand.u32 %v1799, 4294901760
        %1801 = vmatpush2.msra.mxu0 %v1800
        %1802 = vmatprep.subr.mxu0 0.0
        %v1803 = vand.u32 %v231, 4294901760
        %v1804 = vsub.f32 %v231, %v1803
        %v1805 = vand.u32 %v1804, 4294901760
        %1806 = vmatpush2.msra.mxu0 %v1805
        %1807 = vmatprep.subr.mxu0 0.0
        %v1808 = vand.u32 %v230, 4294901760
        %v1809 = vsub.f32 %v230, %v1808
        %v1810 = vand.u32 %v1809, 4294901760
        %1811 = vmatpush2.msra.mxu0 %v1810
        %1812 = vmatprep.subr.mxu0 0.0
        %v1813 = vand.u32 %v229, 4294901760
        %v1814 = vsub.f32 %v229, %v1813
        %v1815 = vand.u32 %v1814, 4294901760
        %1816 = vmatpush2.msra.mxu0 %v1815
        %1817 = vmatprep.subr.mxu0 0.0
        %v1818 = vand.u32 %v228, 4294901760
        %v1819 = vsub.f32 %v228, %v1818
        %v1820 = vand.u32 %v1819, 4294901760
        %1821 = vmatpush2.msra.mxu0 %v1820
        %1822 = vmatprep.subr.mxu0 0.0
        %v1823 = vand.u32 %v227, 4294901760
        %v1824 = vsub.f32 %v227, %v1823
        %v1825 = vand.u32 %v1824, 4294901760
        %1826 = vmatpush2.msra.mxu0 %v1825
        %1827 = vmatprep.subr.mxu0 0.0
        %v1828 = vand.u32 %v226, 4294901760
        %v1829 = vsub.f32 %v226, %v1828
        %v1830 = vand.u32 %v1829, 4294901760
        %1831 = vmatpush2.msra.mxu0 %v1830
        %1832 = vmatprep.subr.mxu0 0.0
        %v1833 = vand.u32 %v225, 4294901760
        %v1834 = vsub.f32 %v225, %v1833
        %v1835 = vand.u32 %v1834, 4294901760
        %1836 = vmatpush2.msra.mxu0 %v1835
        %1837 = vmatprep.subr.mxu0 0.0
        %v1838 = vand.u32 %v224, 4294901760
        %v1839 = vsub.f32 %v224, %v1838
        %v1840 = vand.u32 %v1839, 4294901760
        %1841 = vmatpush2.msra.mxu0 %v1840
        %1842 = vmatprep.subr.mxu0 0.0
        %v1843 = vand.u32 %v223, 4294901760
        %v1844 = vsub.f32 %v223, %v1843
        %v1845 = vand.u32 %v1844, 4294901760
        %1846 = vmatpush2.msra.mxu0 %v1845
        %1847 = vmatprep.subr.mxu0 0.0
        %v1848 = vand.u32 %v222, 4294901760
        %v1849 = vsub.f32 %v222, %v1848
        %v1850 = vand.u32 %v1849, 4294901760
        %1851 = vmatpush2.msra.mxu0 %v1850
        %v1852 = vand.u32 %v173, 4294901760
        %1853 = vmatprep.mubr.f32.mxu0 %v1852
        %v1854 = vand.u32 %v172, 4294901760
        %1855 = vmatmul.mubr.f32.gmra.mxu0 %v1854
        %v1856 = vpop.f32.mrf.mxu0
        %v1857 = vadd.f32 %v1689, %v1856
        %v1858 = vpop.f32.mrf.mxu0
        %1859 = vdwg.mxu0
        %1860 = vmatprep.subr.mxu0 0.0
        %v1861 = vand.u32 %v221, 4294901760
        %1862 = vmatpush1.msra.mxu0 %v1861
        %1863 = vmatprep.subr.mxu0 0.0
        %v1864 = vand.u32 %v220, 4294901760
        %1865 = vmatpush1.msra.mxu0 %v1864
        %1866 = vmatprep.subr.mxu0 0.0
        %v1867 = vand.u32 %v219, 4294901760
        %1868 = vmatpush1.msra.mxu0 %v1867
        %1869 = vmatprep.subr.mxu0 0.0
        %v1870 = vand.u32 %v218, 4294901760
        %1871 = vmatpush1.msra.mxu0 %v1870
        %1872 = vmatprep.subr.mxu0 0.0
        %v1873 = vand.u32 %v217, 4294901760
        %1874 = vmatpush1.msra.mxu0 %v1873
        %1875 = vmatprep.subr.mxu0 0.0
        %v1876 = vand.u32 %v216, 4294901760
        %1877 = vmatpush1.msra.mxu0 %v1876
        %1878 = vmatprep.subr.mxu0 0.0
        %v1879 = vand.u32 %v215, 4294901760
        %1880 = vmatpush1.msra.mxu0 %v1879
        %1881 = vmatprep.subr.mxu0 0.0
        %v1882 = vand.u32 %v214, 4294901760
        %1883 = vmatpush1.msra.mxu0 %v1882
        %1884 = vmatprep.subr.mxu0 0.0
        %v1885 = vand.u32 %v213, 4294901760
        %1886 = vmatpush1.msra.mxu0 %v1885
        %1887 = vmatprep.subr.mxu0 0.0
        %v1888 = vand.u32 %v212, 4294901760
        %1889 = vmatpush1.msra.mxu0 %v1888
        %1890 = vmatprep.subr.mxu0 0.0
        %v1891 = vand.u32 %v211, 4294901760
        %1892 = vmatpush1.msra.mxu0 %v1891
        %1893 = vmatprep.subr.mxu0 0.0
        %v1894 = vand.u32 %v210, 4294901760
        %1895 = vmatpush1.msra.mxu0 %v1894
        %1896 = vmatprep.subr.mxu0 0.0
        %v1897 = vand.u32 %v209, 4294901760
        %1898 = vmatpush1.msra.mxu0 %v1897
        %1899 = vmatprep.subr.mxu0 0.0
        %v1900 = vand.u32 %v208, 4294901760
        %1901 = vmatpush1.msra.mxu0 %v1900
        %1902 = vmatprep.subr.mxu0 0.0
        %v1903 = vand.u32 %v207, 4294901760
        %1904 = vmatpush1.msra.mxu0 %v1903
        %1905 = vmatprep.subr.mxu0 0.0
        %v1906 = vand.u32 %v206, 4294901760
        %1907 = vmatpush1.msra.mxu0 %v1906
        %1908 = vmatprep.subr.mxu0 0.0
        %v1909 = vand.u32 %v237, 4294901760
        %1910 = vmatpush2.msra.mxu0 %v1909
        %1911 = vmatprep.subr.mxu0 0.0
        %v1912 = vand.u32 %v236, 4294901760
        %1913 = vmatpush2.msra.mxu0 %v1912
        %1914 = vmatprep.subr.mxu0 0.0
        %v1915 = vand.u32 %v235, 4294901760
        %1916 = vmatpush2.msra.mxu0 %v1915
        %1917 = vmatprep.subr.mxu0 0.0
        %v1918 = vand.u32 %v234, 4294901760
        %1919 = vmatpush2.msra.mxu0 %v1918
        %1920 = vmatprep.subr.mxu0 0.0
        %v1921 = vand.u32 %v233, 4294901760
        %1922 = vmatpush2.msra.mxu0 %v1921
        %1923 = vmatprep.subr.mxu0 0.0
        %v1924 = vand.u32 %v232, 4294901760
        %1925 = vmatpush2.msra.mxu0 %v1924
        %1926 = vmatprep.subr.mxu0 0.0
        %v1927 = vand.u32 %v231, 4294901760
        %1928 = vmatpush2.msra.mxu0 %v1927
        %1929 = vmatprep.subr.mxu0 0.0
        %v1930 = vand.u32 %v230, 4294901760
        %1931 = vmatpush2.msra.mxu0 %v1930
        %1932 = vmatprep.subr.mxu0 0.0
        %v1933 = vand.u32 %v229, 4294901760
        %1934 = vmatpush2.msra.mxu0 %v1933
        %1935 = vmatprep.subr.mxu0 0.0
        %v1936 = vand.u32 %v228, 4294901760
        %1937 = vmatpush2.msra.mxu0 %v1936
        %1938 = vmatprep.subr.mxu0 0.0
        %v1939 = vand.u32 %v227, 4294901760
        %1940 = vmatpush2.msra.mxu0 %v1939
        %1941 = vmatprep.subr.mxu0 0.0
        %v1942 = vand.u32 %v226, 4294901760
        %1943 = vmatpush2.msra.mxu0 %v1942
        %1944 = vmatprep.subr.mxu0 0.0
        %v1945 = vand.u32 %v225, 4294901760
        %1946 = vmatpush2.msra.mxu0 %v1945
        %1947 = vmatprep.subr.mxu0 0.0
        %v1948 = vand.u32 %v224, 4294901760
        %1949 = vmatpush2.msra.mxu0 %v1948
        %1950 = vmatprep.subr.mxu0 0.0
        %v1951 = vand.u32 %v223, 4294901760
        %1952 = vmatpush2.msra.mxu0 %v1951
        %1953 = vmatprep.subr.mxu0 0.0
        %v1954 = vand.u32 %v222, 4294901760
        %1955 = vmatpush2.msra.mxu0 %v1954
        %v1956 = vand.u32 %v173, 4294901760
        %1957 = vmatprep.mubr.f32.mxu0 %v1956
        %v1958 = vand.u32 %v172, 4294901760
        %1959 = vmatmul.mubr.f32.gmra.mxu0 %v1958
        %v1960 = vpop.f32.mrf.mxu0
        %v1961 = vadd.f32 %v1857, %v1960
        %v1962 = vpop.f32.mrf.mxu0
        %1963 = vdwg.mxu0
        %1964 = vst [vmem:[%s164] sm:$0xff] %v1961
        %s1965 = sand.u32 %s94, 1
        %s1966 = scalar_lea.sflag [#allocation4], %s1965
        %s1967 = sand.u32 %s94, 1
        %s1968 = smul.addr %s1967, 8
        %s1969 = scalar_lea.vmem [#allocation3], %s1968
        // Predicated region
        $region33: #{linear_regression_forward.1} parent=31 // pred_check
          %p1970 = pneg %p104
        $region34: #{linear_regression_forward.1} parent=31 // pred_check_branch
          %1972 = sbr.rel (%p1970) target = $region36
        $region35: #{linear_regression_forward.1} parent=31 // pred_region
          %s1974 = ssub.s32 128, 128
          %1975 = vsyncadd %s1966, %s1974
          %s1976 = smul.addr %s18, 128
          %s1977 = scalar_lea.hbm %s3, %s1976
          %s1979 = sshll.u32 %s1969, 4
          %s1980 = int_to_ptr.vmem [resolvable:$true] %s1979
          %1982 = dma.vmem_to_hbm [thread:$0]  %s1980, 128, %s1977, %s1966
        $region36: #{linear_regression_forward.1} parent=31 // pred_fallthru
          _
      $region32: #{linear_regression_forward.1} parent=5 // pred_fallthru
        _
      %p1983 = scmp.le.s32.totalorder 2, %s13
      // Predicated region
      $region37: #{linear_regression_forward.1} parent=5 // pred_check
        %p1984 = pneg %p1983
      $region38: #{linear_regression_forward.1} parent=5 // pred_check_branch
        %1986 = sbr.rel (%p1984) target = $region40
      $region39: #{linear_regression_forward.1} parent=5 // pred_region
        %s1987 = ssub.s32 %s13, 2
        // Predicated region
        $region41: #{linear_regression_forward.1} parent=39 // pred_check
          %p1988 = pneg %p110
        $region42: #{linear_regression_forward.1} parent=39 // pred_check_branch
          %1990 = sbr.rel (%p1988) target = $region44
        $region43: #{linear_regression_forward.1} parent=39 // pred_region
          %s1991 = sand.u32 %s95, 1
          %s1992 = scalar_lea.sflag [#allocation4], %s1991
          %s1993 = sand.u32 %s95, 1
          %s1994 = smul.addr %s1993, 8
          %s1995 = scalar_lea.vmem [#allocation3], %s1994
          %1996 = dma.done %s1992, 128
        $region44: #{linear_regression_forward.1} parent=39 // pred_fallthru
          _
      $region40: #{linear_regression_forward.1} parent=5 // pred_fallthru
        _
    $region6: #{linear_regression_forward.1} parent=1 // loop_footer
      %s17 = sadd.s32 1, %s13
    $region7: #{linear_regression_forward.1} parent=1 // loop_footer_branch
      %12 = sbr.rel target = $region3
    $region8: #{linear_regression_forward.1} parent=1 // loop_exit
      _
    %1997 = vsyncpa [#allocation4], 1
    %s1998 = scalar_lea.sflag [#allocation4], 1
    %1999 = vsyncpa %s1998, 1

</llo_original>
